<compile_context>
chip_gen: v5e
topology: v5e:2x2
jax: 0.10.0
libtpu: 0.0.40
codegen_flags: <defaults>
</compile_context>

<pallas_src>
import math
import functools

import jax
import jax.numpy as jnp
from jax import lax
from jax.experimental import pallas as pl
from jax.experimental.pallas import tpu as pltpu

# ---- small CLIP-like text transformer config ------------------------------
N = 2            # batch (number of prompts)
L = 8            # context length
D = 32           # transformer width
H = 4            # attention heads
DH = D // H      # head dim
E = 32           # text_projection output dim (embed dim)
E_PAD = 128      # lane-dense padded projection width (multiple of 128)
LAYERS = 2       # transformer depth
EPS = 1e-5       # LayerNorm eps (torch default)
DTYPE = jnp.float32     # clip_model.dtype stand-in
BF = jnp.bfloat16       # MXU operand dtype (accumulation stays f32)
NL = N * L
NEG_INF = -1e30         # finite large-negative for the causal mask
APPROX_RECIP = True     # EUP reciprocal for inference; set False for training


def _layer_norm(x, w, b):
    mu = jnp.mean(x, axis=-1, keepdims=True)
    var = jnp.mean((x - mu) ** 2, axis=-1, keepdims=True)
    return (x - mu) * lax.rsqrt(var + EPS) * w + b


def _split_heads(t2d):
    # (NL, D) -> (H*N, L, DH); batch index b = h*N + n.
    heads = [t2d[:, h * DH:(h + 1) * DH] for h in range(H)]   # H lane slices
    t = jnp.stack(heads, axis=0)                              # (H, NL, DH)
    return t.reshape(H * N, L, DH)                            # leading-dim split


def _merge_heads(t):
    # (H*N, L, DH) -> (NL, D), head-major columns (matches torch out_proj).
    t = t.reshape(H, NL, DH)
    return jnp.concatenate([t[h] for h in range(H)], axis=-1)


# ---------------------------------------------------------------------------
# Single fused kernel, grid over LAYERS: pos-emb add, residual attention
# block per grid step (weights streamed per layer), EOT one-hot gather,
# ln_final, text_projection in the last step's epilogue.
# ---------------------------------------------------------------------------
def text_encoder_kernel(x_ref, pos_ref, eot_ref,
                        ln1w, ln1b, qkvw, qkvb, ow, ob,
                        ln2w, ln2b, fcw, fcb, pw, pb,
                        lnfw, lnfb, proj,
                        o_ref, x_scr):
    layer = pl.program_id(0)

    # ---- prologue (layer 0 only): x = prompts + positional_embedding ----
    @pl.when(layer == 0)
    def _():
        x0 = x_ref[...].astype(jnp.float32) + pos_ref[...].astype(jnp.float32)
        x_scr[...] = x0.reshape(NL, D)

    x = x_scr[...]                                            # (NL, D) f32

    # causal mask (CLIP build_attention_mask): one build + one broadcast per
    # layer (hoisted out of any per-head work).
    row = lax.broadcasted_iota(jnp.int32, (L, L), 0)
    col = lax.broadcasted_iota(jnp.int32, (L, L), 1)
    mask = jnp.where(col <= row, 0.0, NEG_INF).astype(jnp.float32)   # (L, L)

    # ---- attention branch (pre-LN; 1/sqrt(DH) folded into q weights) ----
    h = _layer_norm(x, ln1w[0], ln1b[0])
    qkv = jnp.dot(h.astype(BF), qkvw[0],
                  preferred_element_type=jnp.float32) + qkvb[0]      # (NL, 3D)
    q = _split_heads(qkv[:, 0 * D:1 * D])                    # (H*N, L, DH)
    k = _split_heads(qkv[:, 1 * D:2 * D])
    v = _split_heads(qkv[:, 2 * D:3 * D])

    s = jnp.einsum('bqd,bkd->bqk', q.astype(BF), k.astype(BF),
                   preferred_element_type=jnp.float32)       # (H*N, L, L)
    s = s + mask
    s = s - jnp.max(s, axis=-1, keepdims=True)
    p = jnp.exp(s)                                            # f32 softmax
    p = p * pl.reciprocal(jnp.sum(p, axis=-1, keepdims=True),
                          approx=APPROX_RECIP)

    o = jnp.einsum('bqk,bkd->bqd', p.astype(BF), v.astype(BF),
                   preferred_element_type=jnp.float32)        # (H*N, L, DH)
    o2d = _merge_heads(o)                                     # (NL, D)
    x = x + jnp.dot(o2d.astype(BF), ow[0],
                    preferred_element_type=jnp.float32) + ob[0]

    # ---- MLP branch (pre-LN, QuickGELU in f32) ---------------------------
    h2 = _layer_norm(x, ln2w[0], ln2b[0])
    hfc = jnp.dot(h2.astype(BF), fcw[0],
                  preferred_element_type=jnp.float32) + fcb[0]
    hfc = hfc * jax.nn.sigmoid(1.702 * hfc)
    x = x + jnp.dot(hfc.astype(BF), pw[0],
                    preferred_element_type=jnp.float32) + pb[0]

    x_scr[...] = x                                            # carry to next layer

    # ---- epilogue (last layer): EOT one-hot gather, ln_final, projection --
    @pl.when(layer == LAYERS - 1)
    def _():
        # one-hot over positions (OOB eot -> all-zero row rather than a
        # silent wrong-row read; no dynamic VMEM slicing needed).
        x3d = x.reshape(N, L, D)
        onehot = (lax.broadcasted_iota(jnp.int32, (N, L), 1)
                  == eot_ref[...]).astype(jnp.float32)        # (N, L)
        x_eot = jnp.sum(x3d * onehot[:, :, None], axis=1)     # (N, D)
        hf = _layer_norm(x_eot, lnfw[...], lnfb[...])
        o_ref[...] = jnp.dot(hf.astype(BF), proj[...],
                             preferred_element_type=jnp.float32).astype(o_ref.dtype)


_BLOCK_PARAM_KEYS = ("ln1_w", "ln1_b", "qkv_w", "qkv_b", "out_w", "out_b",
                     "ln2_w", "ln2_b", "fc_w", "fc_b", "proj_w", "proj_b")


# ---------------------------------------------------------------------------
# Parameter init (deterministic, synthetic) + one-time weight transform
# ---------------------------------------------------------------------------
def init_params(key):
    keys = iter(jax.random.split(key, 8 * LAYERS + 8))
    nrm = lambda shape: (0.02 * jax.random.normal(next(keys), shape)).astype(DTYPE)

    layers = []
    for _ in range(LAYERS):
        layers.append({
            "ln1_w": jnp.ones((1, D), DTYPE),
            "ln1_b": jnp.zeros((1, D), DTYPE),
            "qkv_w": nrm((D, 3 * D)),      # torch in_proj_weight (3D,D), pre-transposed
            "qkv_b": nrm((1, 3 * D)),
            "out_w": nrm((D, D)),          # torch out_proj.weight (D,D), pre-transposed
            "out_b": nrm((1, D)),
            "ln2_w": jnp.ones((1, D), DTYPE),
            "ln2_b": jnp.zeros((1, D), DTYPE),
            "fc_w":  nrm((D, 4 * D)),      # torch c_fc.weight (4D,D), pre-transposed
            "fc_b":  nrm((1, 4 * D)),
            "proj_w": nrm((4 * D, D)),     # torch c_proj.weight (D,4D), pre-transposed
            "proj_b": nrm((1, D)),
        })

    return {
        "pos_emb": nrm((L, D)),            # positional_embedding (L, D)
        "layers": layers,
        "lnf_w": jnp.ones((1, D), DTYPE),  # ln_final
        "lnf_b": jnp.zeros((1, D), DTYPE),
        "text_proj": nrm((D, E)),          # text_projection (width, embed_dim)
    }


def prepare_params(params):
    """Stack per-layer weights along a leading LAYERS axis, fold the 1/sqrt(DH)
    attention scale into the q columns, cast matmul weights to bf16 (AFTER the
    fold), and lane-pad the text projection to E_PAD."""
    layers = params["layers"]
    stacked = {k: jnp.stack([lp[k] for lp in layers], axis=0)
               for k in _BLOCK_PARAM_KEYS}

    scale = 1.0 / math.sqrt(DH)
    q_scale = jnp.concatenate([jnp.full((D,), scale, jnp.float32),
                               jnp.ones((2 * D,), jnp.float32)])
    stacked["qkv_w"] = stacked["qkv_w"] * q_scale[None, None, :]
    stacked["qkv_b"] = stacked["qkv_b"] * q_scale[None, None, :]

    # bf16 matmul operands (biases / LN params stay f32).
    for k in ("qkv_w", "out_w", "fc_w", "proj_w"):
        stacked[k] = stacked[k].astype(BF)

    proj = params["text_proj"].astype(jnp.float32)
    proj_pad = jnp.zeros((D, E_PAD), jnp.float32).at[:, :E].set(proj)
    stacked["text_proj_pad"] = proj_pad.astype(BF)
    return stacked


# ---------------------------------------------------------------------------
# Full forward: one pallas_call with a grid over LAYERS (weights streamed).
# ---------------------------------------------------------------------------
def text_encoder_forward(prompts, tokenized_prompts, params, stacked):
    # EOT position = argmax over token ids (trivial glue, stays in XLA)
    eot = jnp.argmax(tokenized_prompts, axis=-1).astype(jnp.int32).reshape(N, 1)

    layer_weights = [stacked[k] for k in _BLOCK_PARAM_KEYS]
    resident_inputs = [prompts, params["pos_emb"], eot]
    tail_inputs = [params["lnf_w"], params["lnf_b"], stacked["text_proj_pad"]]

    def resident_spec(arr):
        nd = arr.ndim
        return pl.BlockSpec(arr.shape, lambda l, _nd=nd: (0,) * _nd)

    def layer_spec(arr):                       # stream one layer's weights per step
        return pl.BlockSpec((1,) + arr.shape[1:], lambda l: (l, 0, 0))

    in_specs = ([resident_spec(a) for a in resident_inputs]
                + [layer_spec(w) for w in layer_weights]
                + [resident_spec(a) for a in tail_inputs])

    grid_spec = pltpu.PrefetchScalarGridSpec(
        num_scalar_prefetch=0,
        grid=(LAYERS,),
        in_specs=in_specs,
        out_specs=pl.BlockSpec((N, E_PAD), lambda l: (0, 0)),
        scratch_shapes=[pltpu.VMEM((NL, D), jnp.float32)],   # residual carry
    )

    out_pad = pl.pallas_call(
        text_encoder_kernel,
        out_shape=jax.ShapeDtypeStruct((N, E_PAD), DTYPE),
        grid_spec=grid_spec,
        compiler_params=pltpu.CompilerParams(
            dimension_semantics=("arbitrary",)),
    )(*resident_inputs, *layer_weights, *tail_inputs)

    return out_pad[:, :E]                      # strip lane padding


if __name__ == "__main__":
    key = jax.random.PRNGKey(0)
    k_prompts, k_tok, k_params = jax.random.split(key, 3)

    prompts = jax.random.normal(k_prompts, (N, L, D), DTYPE)
    tokenized_prompts = jax.random.randint(k_tok, (N, L), 1, 100, dtype=jnp.int32)
    # place an EOT-like max token so argmax picks deterministic positions
    tokenized_prompts = tokenized_prompts.at[0, 5].set(49407)
    tokenized_prompts = tokenized_prompts.at[1, 7].set(49407)

    params = init_params(k_params)
    stacked = prepare_params(params)

    fwd = jax.jit(functools.partial(text_encoder_forward,
                                    params=params, stacked=stacked))
    out = fwd(prompts, tokenized_prompts)
    out = jax.block_until_ready(out)

    assert out.shape == (N, E) and out.dtype == DTYPE
    assert bool(jnp.all(jnp.isfinite(out)))
    print("KERNEL_OK")
</pallas_src>

<mosaic_0001>
module attributes {stable_mosaic.version = 11 : i64} {
  func.func @text_encoder_kernel(%arg0: i32, %arg1: memref<2x8x32xf32, #tpu.memory_space<vmem>>, %arg2: memref<8x32xf32, #tpu.memory_space<vmem>>, %arg3: memref<2x1xi32, #tpu.memory_space<vmem>>, %arg4: memref<1x1x32xf32, #tpu.memory_space<vmem>>, %arg5: memref<1x1x32xf32, #tpu.memory_space<vmem>>, %arg6: memref<1x32x96xbf16, #tpu.memory_space<vmem>>, %arg7: memref<1x1x96xf32, #tpu.memory_space<vmem>>, %arg8: memref<1x32x32xbf16, #tpu.memory_space<vmem>>, %arg9: memref<1x1x32xf32, #tpu.memory_space<vmem>>, %arg10: memref<1x1x32xf32, #tpu.memory_space<vmem>>, %arg11: memref<1x1x32xf32, #tpu.memory_space<vmem>>, %arg12: memref<1x32x128xbf16, #tpu.memory_space<vmem>>, %arg13: memref<1x1x128xf32, #tpu.memory_space<vmem>>, %arg14: memref<1x128x32xbf16, #tpu.memory_space<vmem>>, %arg15: memref<1x1x32xf32, #tpu.memory_space<vmem>>, %arg16: memref<1x32xf32, #tpu.memory_space<vmem>>, %arg17: memref<1x32xf32, #tpu.memory_space<vmem>>, %arg18: memref<32x128xbf16, #tpu.memory_space<vmem>>, %arg19: memref<2x128xf32, #tpu.memory_space<vmem>>, %arg20: memref<16x32xf32, #tpu.memory_space<vmem>>) attributes {dimension_semantics = [#tpu.dimension_semantics<arbitrary>], iteration_bounds = array<i64: 2>, scalar_prefetch = 0 : i64, scratch_operands = 1 : i64, tpu.core_type = #tpu.core_type<tc>, window_params = [{pipeline_mode = #tpu.pipeline_mode<synchronous>, transform_indices = @transform_0, window_bounds = array<i64: 2, 8, 32>}, {pipeline_mode = #tpu.pipeline_mode<synchronous>, transform_indices = @transform_1, window_bounds = array<i64: 8, 32>}, {pipeline_mode = #tpu.pipeline_mode<synchronous>, transform_indices = @transform_2, window_bounds = array<i64: 2, 1>}, {transform_indices = @transform_3, window_bounds = array<i64: 1, 1, 32>}, {transform_indices = @transform_4, window_bounds = array<i64: 1, 1, 32>}, {transform_indices = @transform_5, window_bounds = array<i64: 1, 32, 96>}, {transform_indices = @transform_6, window_bounds = array<i64: 1, 1, 96>}, {transform_indices = @transform_7, window_bounds = array<i64: 1, 32, 32>}, {transform_indices = @transform_8, window_bounds = array<i64: 1, 1, 32>}, {transform_indices = @transform_9, window_bounds = array<i64: 1, 1, 32>}, {transform_indices = @transform_10, window_bounds = array<i64: 1, 1, 32>}, {transform_indices = @transform_11, window_bounds = array<i64: 1, 32, 128>}, {transform_indices = @transform_12, window_bounds = array<i64: 1, 1, 128>}, {transform_indices = @transform_13, window_bounds = array<i64: 1, 128, 32>}, {transform_indices = @transform_14, window_bounds = array<i64: 1, 1, 32>}, {pipeline_mode = #tpu.pipeline_mode<synchronous>, transform_indices = @transform_15, window_bounds = array<i64: 1, 32>}, {pipeline_mode = #tpu.pipeline_mode<synchronous>, transform_indices = @transform_16, window_bounds = array<i64: 1, 32>}, {pipeline_mode = #tpu.pipeline_mode<synchronous>, transform_indices = @transform_17, window_bounds = array<i64: 32, 128>}, {pipeline_mode = #tpu.pipeline_mode<synchronous>, transform_indices = @transform_18, window_bounds = array<i64: 2, 128>}]} {
    %c0_i32 = arith.constant 0 : i32
    %0 = arith.cmpi eq, %arg0, %c0_i32 : i32
    %1 = arith.extui %0 : i1 to i32
    %c0_i32_0 = arith.constant 0 : i32
    %2 = arith.cmpi ne, %1, %c0_i32_0 : i32
    scf.if %2 {
      %c0_62 = arith.constant 0 : index
      %c0_63 = arith.constant 0 : index
      %c0_64 = arith.constant 0 : index
      %170 = vector.load %arg1[%c0_62, %c0_63, %c0_64] : memref<2x8x32xf32, #tpu.memory_space<vmem>>, vector<2x8x32xf32>
      %c0_65 = arith.constant 0 : index
      %c0_66 = arith.constant 0 : index
      %171 = vector.load %arg2[%c0_65, %c0_66] : memref<8x32xf32, #tpu.memory_space<vmem>>, vector<8x32xf32>
      %172 = vector.shape_cast %171 : vector<8x32xf32> to vector<1x8x32xf32>
      %173 = vector.broadcast %172 : vector<1x8x32xf32> to vector<2x8x32xf32>
      %174 = arith.addf %170, %173 : vector<2x8x32xf32>
      %175 = vector.shape_cast %174 : vector<2x8x32xf32> to vector<16x32xf32>
      %c0_67 = arith.constant 0 : index
      %c0_68 = arith.constant 0 : index
      %176 = vector.load %arg20[%c0_67, %c0_68] : memref<16x32xf32, #tpu.memory_space<vmem>>, vector<16x32xf32>
      tpu.vector_store %arg20[%c0_67, %c0_68], %175 {strides = array<i32>} : memref<16x32xf32, #tpu.memory_space<vmem>>, vector<16x32xf32>,
    } else {
    }
    %c0 = arith.constant 0 : index
    %c0_1 = arith.constant 0 : index
    %3 = vector.load %arg20[%c0, %c0_1] : memref<16x32xf32, #tpu.memory_space<vmem>>, vector<16x32xf32>
    %4 = tpu.iota {dimensions = array<i32: 0>} : vector<8x8xi32>
    %5 = tpu.iota {dimensions = array<i32: 1>} : vector<8x8xi32>
    %6 = arith.cmpi sle, %5, %4 : vector<8x8xi32>
    %cst = arith.constant 0.000000e+00 : f32
    %cst_2 = arith.constant -1.000000e+30 : f32
    %7 = vector.broadcast %cst : f32 to vector<8x8xf32>
    %8 = vector.broadcast %cst_2 : f32 to vector<8x8xf32>
    %9 = arith.select %6, %7, %8 : vector<8x8xi1>, vector<8x8xf32>
    %c0_3 = arith.constant 0 : index
    %c0_4 = arith.constant 0 : index
    %c0_5 = arith.constant 0 : index
    %10 = vector.load %arg4[%c0_3, %c0_4, %c0_5] : memref<1x1x32xf32, #tpu.memory_space<vmem>>, vector<1x1x32xf32>
    %11 = vector.shape_cast %10 : vector<1x1x32xf32> to vector<1x32xf32>
    %c0_6 = arith.constant 0 : index
    %c0_7 = arith.constant 0 : index
    %c0_8 = arith.constant 0 : index
    %12 = vector.load %arg5[%c0_6, %c0_7, %c0_8] : memref<1x1x32xf32, #tpu.memory_space<vmem>>, vector<1x1x32xf32>
    %13 = vector.shape_cast %12 : vector<1x1x32xf32> to vector<1x32xf32>
    %cst_9 = arith.constant dense<0.000000e+00> : vector<16xf32>
    %14 = vector.multi_reduction <add>, %3, %cst_9 [1] : vector<16x32xf32> to vector<16xf32>
    %15 = vector.shape_cast %14 : vector<16xf32> to vector<16x1xf32>
    %cst_10 = arith.constant 3.200000e+01 : f32
    %16 = vector.broadcast %cst_10 : f32 to vector<16x1xf32>
    %17 = arith.divf %15, %16 : vector<16x1xf32>
    %18 = vector.broadcast %17 : vector<16x1xf32> to vector<16x32xf32>
    %19 = arith.subf %3, %18 : vector<16x32xf32>
    %20 = arith.mulf %19, %19 : vector<16x32xf32>
    %cst_11 = arith.constant dense<0.000000e+00> : vector<16xf32>
    %21 = vector.multi_reduction <add>, %20, %cst_11 [1] : vector<16x32xf32> to vector<16xf32>
    %22 = vector.shape_cast %21 : vector<16xf32> to vector<16x1xf32>
    %cst_12 = arith.constant 3.200000e+01 : f32
    %23 = vector.broadcast %cst_12 : f32 to vector<16x1xf32>
    %24 = arith.divf %22, %23 : vector<16x1xf32>
    %25 = vector.broadcast %17 : vector<16x1xf32> to vector<16x32xf32>
    %26 = arith.subf %3, %25 : vector<16x32xf32>
    %cst_13 = arith.constant 9.99999974E-6 : f32
    %27 = vector.broadcast %cst_13 : f32 to vector<16x1xf32>
    %28 = arith.addf %24, %27 : vector<16x1xf32>
    %29 = math.rsqrt %28 : vector<16x1xf32>
    %30 = vector.broadcast %29 : vector<16x1xf32> to vector<16x32xf32>
    %31 = arith.mulf %26, %30 : vector<16x32xf32>
    %32 = vector.broadcast %11 : vector<1x32xf32> to vector<16x32xf32>
    %33 = arith.mulf %31, %32 : vector<16x32xf32>
    %34 = vector.broadcast %13 : vector<1x32xf32> to vector<16x32xf32>
    %35 = arith.addf %33, %34 : vector<16x32xf32>
    %36 = arith.truncf %35 : vector<16x32xf32> to vector<16x32xbf16>
    %c0_14 = arith.constant 0 : index
    %c0_15 = arith.constant 0 : index
    %c0_16 = arith.constant 0 : index
    %37 = vector.load %arg6[%c0_14, %c0_15, %c0_16] : memref<1x32x96xbf16, #tpu.memory_space<vmem>>, vector<1x32x96xbf16>
    %38 = vector.shape_cast %37 : vector<1x32x96xbf16> to vector<32x96xbf16>
    %cst_17 = arith.constant dense<0.000000e+00> : vector<16x96xf32>
    %39 = tpu.matmul %36, %38, %cst_17 {dimension_numbers = #tpu.dot_dimension_numbers<[1], [0], [0], [1], [0, 0, 1, 1], [], []>} : vector<16x32xbf16>, vector<32x96xbf16>, vector<16x96xf32> -> vector<16x96xf32>
    %c0_18 = arith.constant 0 : index
    %c0_19 = arith.constant 0 : index
    %c0_20 = arith.constant 0 : index
    %40 = vector.load %arg7[%c0_18, %c0_19, %c0_20] : memref<1x1x96xf32, #tpu.memory_space<vmem>>, vector<1x1x96xf32>
    %41 = vector.shape_cast %40 : vector<1x1x96xf32> to vector<1x96xf32>
    %42 = vector.broadcast %41 : vector<1x96xf32> to vector<16x96xf32>
    %43 = arith.addf %39, %42 : vector<16x96xf32>
    %44 = vector.extract_strided_slice %43 {offsets = [0, 0], sizes = [16, 32], strides = [1, 1]} : vector<16x96xf32> to vector<16x32xf32>
    %45 = vector.extract_strided_slice %44 {offsets = [0, 0], sizes = [16, 8], strides = [1, 1]} : vector<16x32xf32> to vector<16x8xf32>
    %46 = vector.extract_strided_slice %44 {offsets = [0, 8], sizes = [16, 8], strides = [1, 1]} : vector<16x32xf32> to vector<16x8xf32>
    %47 = vector.extract_strided_slice %44 {offsets = [0, 16], sizes = [16, 8], strides = [1, 1]} : vector<16x32xf32> to vector<16x8xf32>
    %48 = vector.extract_strided_slice %44 {offsets = [0, 24], sizes = [16, 8], strides = [1, 1]} : vector<16x32xf32> to vector<16x8xf32>
    %49 = vector.shape_cast %45 : vector<16x8xf32> to vector<1x16x8xf32>
    %50 = vector.shape_cast %46 : vector<16x8xf32> to vector<1x16x8xf32>
    %51 = vector.shape_cast %47 : vector<16x8xf32> to vector<1x16x8xf32>
    %52 = vector.shape_cast %48 : vector<16x8xf32> to vector<1x16x8xf32>
    %53 = tpu.concatenate %49, %50, %51, %52 in 0 : vector<1x16x8xf32>, vector<1x16x8xf32>, vector<1x16x8xf32>, vector<1x16x8xf32> -> vector<4x16x8xf32>
    %54 = vector.shape_cast %53 : vector<4x16x8xf32> to vector<8x8x8xf32>
    %55 = vector.extract_strided_slice %43 {offsets = [0, 32], sizes = [16, 32], strides = [1, 1]} : vector<16x96xf32> to vector<16x32xf32>
    %56 = vector.extract_strided_slice %55 {offsets = [0, 0], sizes = [16, 8], strides = [1, 1]} : vector<16x32xf32> to vector<16x8xf32>
    %57 = vector.extract_strided_slice %55 {offsets = [0, 8], sizes = [16, 8], strides = [1, 1]} : vector<16x32xf32> to vector<16x8xf32>
    %58 = vector.extract_strided_slice %55 {offsets = [0, 16], sizes = [16, 8], strides = [1, 1]} : vector<16x32xf32> to vector<16x8xf32>
    %59 = vector.extract_strided_slice %55 {offsets = [0, 24], sizes = [16, 8], strides = [1, 1]} : vector<16x32xf32> to vector<16x8xf32>
    %60 = vector.shape_cast %56 : vector<16x8xf32> to vector<1x16x8xf32>
    %61 = vector.shape_cast %57 : vector<16x8xf32> to vector<1x16x8xf32>
    %62 = vector.shape_cast %58 : vector<16x8xf32> to vector<1x16x8xf32>
    %63 = vector.shape_cast %59 : vector<16x8xf32> to vector<1x16x8xf32>
    %64 = tpu.concatenate %60, %61, %62, %63 in 0 : vector<1x16x8xf32>, vector<1x16x8xf32>, vector<1x16x8xf32>, vector<1x16x8xf32> -> vector<4x16x8xf32>
    %65 = vector.shape_cast %64 : vector<4x16x8xf32> to vector<8x8x8xf32>
    %66 = vector.extract_strided_slice %43 {offsets = [0, 64], sizes = [16, 32], strides = [1, 1]} : vector<16x96xf32> to vector<16x32xf32>
    %67 = vector.extract_strided_slice %66 {offsets = [0, 0], sizes = [16, 8], strides = [1, 1]} : vector<16x32xf32> to vector<16x8xf32>
    %68 = vector.extract_strided_slice %66 {offsets = [0, 8], sizes = [16, 8], strides = [1, 1]} : vector<16x32xf32> to vector<16x8xf32>
    %69 = vector.extract_strided_slice %66 {offsets = [0, 16], sizes = [16, 8], strides = [1, 1]} : vector<16x32xf32> to vector<16x8xf32>
    %70 = vector.extract_strided_slice %66 {offsets = [0, 24], sizes = [16, 8], strides = [1, 1]} : vector<16x32xf32> to vector<16x8xf32>
    %71 = vector.shape_cast %67 : vector<16x8xf32> to vector<1x16x8xf32>
    %72 = vector.shape_cast %68 : vector<16x8xf32> to vector<1x16x8xf32>
    %73 = vector.shape_cast %69 : vector<16x8xf32> to vector<1x16x8xf32>
    %74 = vector.shape_cast %70 : vector<16x8xf32> to vector<1x16x8xf32>
    %75 = tpu.concatenate %71, %72, %73, %74 in 0 : vector<1x16x8xf32>, vector<1x16x8xf32>, vector<1x16x8xf32>, vector<1x16x8xf32> -> vector<4x16x8xf32>
    %76 = vector.shape_cast %75 : vector<4x16x8xf32> to vector<8x8x8xf32>
    %77 = arith.truncf %54 : vector<8x8x8xf32> to vector<8x8x8xbf16>
    %78 = arith.truncf %65 : vector<8x8x8xf32> to vector<8x8x8xbf16>
    "tpu.trace_start"() <{level = 10 : i32, message = "bqd,bkd->bqk"}> : () -> ()
    %cst_21 = arith.constant dense<0.000000e+00> : vector<8x8x8xf32>
    %79 = tpu.matmul %77, %78, %cst_21 {dimension_numbers = #tpu.dot_dimension_numbers<[2], [2], [1], [1], [0, 0, 0, 1, 1, 1], [0], [0]>} : vector<8x8x8xbf16>, vector<8x8x8xbf16>, vector<8x8x8xf32> -> vector<8x8x8xf32>
    "tpu.trace_stop"() : () -> ()
    %80 = vector.shape_cast %9 : vector<8x8xf32> to vector<1x8x8xf32>
    %81 = vector.broadcast %80 : vector<1x8x8xf32> to vector<8x8x8xf32>
    %82 = arith.addf %79, %81 : vector<8x8x8xf32>
    %cst_22 = arith.constant dense<0xFF800000> : vector<8x8xf32>
    %83 = vector.multi_reduction <maximumf>, %82, %cst_22 [2] : vector<8x8x8xf32> to vector<8x8xf32>
    %84 = vector.shape_cast %83 : vector<8x8xf32> to vector<8x8x1xf32>
    %85 = vector.broadcast %84 : vector<8x8x1xf32> to vector<8x8x8xf32>
    %86 = arith.subf %82, %85 : vector<8x8x8xf32>
    %87 = math.exp %86 : vector<8x8x8xf32>
    %cst_23 = arith.constant dense<0.000000e+00> : vector<8x8xf32>
    %88 = vector.multi_reduction <add>, %87, %cst_23 [2] : vector<8x8x8xf32> to vector<8x8xf32>
    %89 = vector.shape_cast %88 : vector<8x8xf32> to vector<8x8x1xf32>
    %90 = tpu.reciprocal %89 {approx = true} : vector<8x8x1xf32> -> vector<8x8x1xf32>
    %91 = vector.broadcast %90 : vector<8x8x1xf32> to vector<8x8x8xf32>
    %92 = arith.mulf %87, %91 : vector<8x8x8xf32>
    %93 = arith.truncf %92 : vector<8x8x8xf32> to vector<8x8x8xbf16>
    %94 = arith.truncf %76 : vector<8x8x8xf32> to vector<8x8x8xbf16>
    "tpu.trace_start"() <{level = 10 : i32, message = "bqk,bkd->bqd"}> : () -> ()
    %cst_24 = arith.constant dense<0.000000e+00> : vector<8x8x8xf32>
    %95 = tpu.matmul %93, %94, %cst_24 {dimension_numbers = #tpu.dot_dimension_numbers<[2], [1], [1], [2], [0, 0, 0, 1, 1, 2], [0], [0]>} : vector<8x8x8xbf16>, vector<8x8x8xbf16>, vector<8x8x8xf32> -> vector<8x8x8xf32>
    "tpu.trace_stop"() : () -> ()
    %96 = vector.shape_cast %95 : vector<8x8x8xf32> to vector<4x16x8xf32>
    %97 = vector.extract_strided_slice %96 {offsets = [0, 0, 0], sizes = [1, 16, 8], strides = [1, 1, 1]} : vector<4x16x8xf32> to vector<1x16x8xf32>
    %98 = vector.shape_cast %97 : vector<1x16x8xf32> to vector<16x8xf32>
    %99 = vector.extract_strided_slice %96 {offsets = [1, 0, 0], sizes = [1, 16, 8], strides = [1, 1, 1]} : vector<4x16x8xf32> to vector<1x16x8xf32>
    %100 = vector.shape_cast %99 : vector<1x16x8xf32> to vector<16x8xf32>
    %101 = vector.extract_strided_slice %96 {offsets = [2, 0, 0], sizes = [1, 16, 8], strides = [1, 1, 1]} : vector<4x16x8xf32> to vector<1x16x8xf32>
    %102 = vector.shape_cast %101 : vector<1x16x8xf32> to vector<16x8xf32>
    %103 = vector.extract_strided_slice %96 {offsets = [3, 0, 0], sizes = [1, 16, 8], strides = [1, 1, 1]} : vector<4x16x8xf32> to vector<1x16x8xf32>
    %104 = vector.shape_cast %103 : vector<1x16x8xf32> to vector<16x8xf32>
    %105 = tpu.concatenate %98, %100, %102, %104 in 1 : vector<16x8xf32>, vector<16x8xf32>, vector<16x8xf32>, vector<16x8xf32> -> vector<16x32xf32>
    %106 = arith.truncf %105 : vector<16x32xf32> to vector<16x32xbf16>
    %c0_25 = arith.constant 0 : index
    %c0_26 = arith.constant 0 : index
    %c0_27 = arith.constant 0 : index
    %107 = vector.load %arg8[%c0_25, %c0_26, %c0_27] : memref<1x32x32xbf16, #tpu.memory_space<vmem>>, vector<1x32x32xbf16>
    %108 = vector.shape_cast %107 : vector<1x32x32xbf16> to vector<32x32xbf16>
    %cst_28 = arith.constant dense<0.000000e+00> : vector<16x32xf32>
    %109 = tpu.matmul %106, %108, %cst_28 {dimension_numbers = #tpu.dot_dimension_numbers<[1], [0], [0], [1], [0, 0, 1, 1], [], []>} : vector<16x32xbf16>, vector<32x32xbf16>, vector<16x32xf32> -> vector<16x32xf32>
    %110 = arith.addf %3, %109 : vector<16x32xf32>
    %c0_29 = arith.constant 0 : index
    %c0_30 = arith.constant 0 : index
    %c0_31 = arith.constant 0 : index
    %111 = vector.load %arg9[%c0_29, %c0_30, %c0_31] : memref<1x1x32xf32, #tpu.memory_space<vmem>>, vector<1x1x32xf32>
    %112 = vector.shape_cast %111 : vector<1x1x32xf32> to vector<1x32xf32>
    %113 = vector.broadcast %112 : vector<1x32xf32> to vector<16x32xf32>
    %114 = arith.addf %110, %113 : vector<16x32xf32>
    %c0_32 = arith.constant 0 : index
    %c0_33 = arith.constant 0 : index
    %c0_34 = arith.constant 0 : index
    %115 = vector.load %arg10[%c0_32, %c0_33, %c0_34] : memref<1x1x32xf32, #tpu.memory_space<vmem>>, vector<1x1x32xf32>
    %116 = vector.shape_cast %115 : vector<1x1x32xf32> to vector<1x32xf32>
    %c0_35 = arith.constant 0 : index
    %c0_36 = arith.constant 0 : index
    %c0_37 = arith.constant 0 : index
    %117 = vector.load %arg11[%c0_35, %c0_36, %c0_37] : memref<1x1x32xf32, #tpu.memory_space<vmem>>, vector<1x1x32xf32>
    %118 = vector.shape_cast %117 : vector<1x1x32xf32> to vector<1x32xf32>
    %cst_38 = arith.constant dense<0.000000e+00> : vector<16xf32>
    %119 = vector.multi_reduction <add>, %114, %cst_38 [1] : vector<16x32xf32> to vector<16xf32>
    %120 = vector.shape_cast %119 : vector<16xf32> to vector<16x1xf32>
    %cst_39 = arith.constant 3.200000e+01 : f32
    %121 = vector.broadcast %cst_39 : f32 to vector<16x1xf32>
    %122 = arith.divf %120, %121 : vector<16x1xf32>
    %123 = vector.broadcast %122 : vector<16x1xf32> to vector<16x32xf32>
    %124 = arith.subf %114, %123 : vector<16x32xf32>
    %125 = arith.mulf %124, %124 : vector<16x32xf32>
    %cst_40 = arith.constant dense<0.000000e+00> : vector<16xf32>
    %126 = vector.multi_reduction <add>, %125, %cst_40 [1] : vector<16x32xf32> to vector<16xf32>
    %127 = vector.shape_cast %126 : vector<16xf32> to vector<16x1xf32>
    %cst_41 = arith.constant 3.200000e+01 : f32
    %128 = vector.broadcast %cst_41 : f32 to vector<16x1xf32>
    %129 = arith.divf %127, %128 : vector<16x1xf32>
    %130 = vector.broadcast %122 : vector<16x1xf32> to vector<16x32xf32>
    %131 = arith.subf %114, %130 : vector<16x32xf32>
    %cst_42 = arith.constant 9.99999974E-6 : f32
    %132 = vector.broadcast %cst_42 : f32 to vector<16x1xf32>
    %133 = arith.addf %129, %132 : vector<16x1xf32>
    %134 = math.rsqrt %133 : vector<16x1xf32>
    %135 = vector.broadcast %134 : vector<16x1xf32> to vector<16x32xf32>
    %136 = arith.mulf %131, %135 : vector<16x32xf32>
    %137 = vector.broadcast %116 : vector<1x32xf32> to vector<16x32xf32>
    %138 = arith.mulf %136, %137 : vector<16x32xf32>
    %139 = vector.broadcast %118 : vector<1x32xf32> to vector<16x32xf32>
    %140 = arith.addf %138, %139 : vector<16x32xf32>
    %141 = arith.truncf %140 : vector<16x32xf32> to vector<16x32xbf16>
    %c0_43 = arith.constant 0 : index
    %c0_44 = arith.constant 0 : index
    %c0_45 = arith.constant 0 : index
    %142 = vector.load %arg12[%c0_43, %c0_44, %c0_45] : memref<1x32x128xbf16, #tpu.memory_space<vmem>>, vector<1x32x128xbf16>
    %143 = vector.shape_cast %142 : vector<1x32x128xbf16> to vector<32x128xbf16>
    %cst_46 = arith.constant dense<0.000000e+00> : vector<16x128xf32>
    %144 = tpu.matmul %141, %143, %cst_46 {dimension_numbers = #tpu.dot_dimension_numbers<[1], [0], [0], [1], [0, 0, 1, 1], [], []>} : vector<16x32xbf16>, vector<32x128xbf16>, vector<16x128xf32> -> vector<16x128xf32>
    %c0_47 = arith.constant 0 : index
    %c0_48 = arith.constant 0 : index
    %c0_49 = arith.constant 0 : index
    %145 = vector.load %arg13[%c0_47, %c0_48, %c0_49] : memref<1x1x128xf32, #tpu.memory_space<vmem>>, vector<1x1x128xf32>
    %146 = vector.shape_cast %145 : vector<1x1x128xf32> to vector<1x128xf32>
    %147 = vector.broadcast %146 : vector<1x128xf32> to vector<16x128xf32>
    %148 = arith.addf %144, %147 : vector<16x128xf32>
    %cst_50 = arith.constant 1.702000e+00 : f32
    %149 = vector.broadcast %cst_50 : f32 to vector<16x128xf32>
    %150 = arith.mulf %149, %148 : vector<16x128xf32>
    %151 = arith.negf %150 : vector<16x128xf32>
    %152 = math.exp %151 : vector<16x128xf32>
    %cst_51 = arith.constant 1.000000e+00 : f32
    %153 = vector.broadcast %cst_51 : f32 to vector<16x128xf32>
    %154 = arith.addf %153, %152 : vector<16x128xf32>
    %155 = arith.divf %153, %154 : vector<16x128xf32>
    %156 = arith.mulf %148, %155 : vector<16x128xf32>
    %157 = arith.truncf %156 : vector<16x128xf32> to vector<16x128xbf16>
    %c0_52 = arith.constant 0 : index
    %c0_53 = arith.constant 0 : index
    %c0_54 = arith.constant 0 : index
    %158 = vector.load %arg14[%c0_52, %c0_53, %c0_54] : memref<1x128x32xbf16, #tpu.memory_space<vmem>>, vector<1x128x32xbf16>
    %159 = vector.shape_cast %158 : vector<1x128x32xbf16> to vector<128x32xbf16>
    %cst_55 = arith.constant dense<0.000000e+00> : vector<16x32xf32>
    %160 = tpu.matmul %157, %159, %cst_55 {dimension_numbers = #tpu.dot_dimension_numbers<[1], [0], [0], [1], [0, 0, 1, 1], [], []>} : vector<16x128xbf16>, vector<128x32xbf16>, vector<16x32xf32> -> vector<16x32xf32>
    %161 = arith.addf %114, %160 : vector<16x32xf32>
    %c0_56 = arith.constant 0 : index
    %c0_57 = arith.constant 0 : index
    %c0_58 = arith.constant 0 : index
    %162 = vector.load %arg15[%c0_56, %c0_57, %c0_58] : memref<1x1x32xf32, #tpu.memory_space<vmem>>, vector<1x1x32xf32>
    %163 = vector.shape_cast %162 : vector<1x1x32xf32> to vector<1x32xf32>
    %164 = vector.broadcast %163 : vector<1x32xf32> to vector<16x32xf32>
    %165 = arith.addf %161, %164 : vector<16x32xf32>
    %c0_59 = arith.constant 0 : index
    %c0_60 = arith.constant 0 : index
    %166 = vector.load %arg20[%c0_59, %c0_60] : memref<16x32xf32, #tpu.memory_space<vmem>>, vector<16x32xf32>
    tpu.vector_store %arg20[%c0_59, %c0_60], %165 {strides = array<i32>} : memref<16x32xf32, #tpu.memory_space<vmem>>, vector<16x32xf32>,
    %c1_i32 = arith.constant 1 : i32
    %167 = arith.cmpi eq, %arg0, %c1_i32 : i32
    %168 = arith.extui %167 : i1 to i32
    %c0_i32_61 = arith.constant 0 : i32
    %169 = arith.cmpi ne, %168, %c0_i32_61 : i32
    scf.if %169 {
      %170 = vector.shape_cast %165 : vector<16x32xf32> to vector<2x8x32xf32>
      %171 = tpu.iota {dimensions = array<i32: 1>} : vector<2x8xi32>
      %c0_62 = arith.constant 0 : index
      %c0_63 = arith.constant 0 : index
      %172 = vector.load %arg3[%c0_62, %c0_63] : memref<2x1xi32, #tpu.memory_space<vmem>>, vector<2x1xi32>
      %173 = vector.broadcast %172 : vector<2x1xi32> to vector<2x8xi32>
      %174 = arith.cmpi eq, %171, %173 : vector<2x8xi32>
      %175 = arith.extui %174 : vector<2x8xi1> to vector<2x8xi32>
      %176 = arith.sitofp %175 : vector<2x8xi32> to vector<2x8xf32>
      %177 = vector.shape_cast %176 : vector<2x8xf32> to vector<2x8x1xf32>
      %178 = vector.broadcast %177 : vector<2x8x1xf32> to vector<2x8x32xf32>
      %179 = arith.mulf %170, %178 : vector<2x8x32xf32>
      %cst_64 = arith.constant dense<0.000000e+00> : vector<2x32xf32>
      %180 = vector.multi_reduction <add>, %179, %cst_64 [1] : vector<2x8x32xf32> to vector<2x32xf32>
      %c0_65 = arith.constant 0 : index
      %c0_66 = arith.constant 0 : index
      %181 = vector.load %arg16[%c0_65, %c0_66] : memref<1x32xf32, #tpu.memory_space<vmem>>, vector<1x32xf32>
      %c0_67 = arith.constant 0 : index
      %c0_68 = arith.constant 0 : index
      %182 = vector.load %arg17[%c0_67, %c0_68] : memref<1x32xf32, #tpu.memory_space<vmem>>, vector<1x32xf32>
      %cst_69 = arith.constant dense<0.000000e+00> : vector<2xf32>
      %183 = vector.multi_reduction <add>, %180, %cst_69 [1] : vector<2x32xf32> to vector<2xf32>
      %184 = vector.shape_cast %183 : vector<2xf32> to vector<2x1xf32>
      %cst_70 = arith.constant 3.200000e+01 : f32
      %185 = vector.broadcast %cst_70 : f32 to vector<2x1xf32>
      %186 = arith.divf %184, %185 : vector<2x1xf32>
      %187 = vector.broadcast %186 : vector<2x1xf32> to vector<2x32xf32>
      %188 = arith.subf %180, %187 : vector<2x32xf32>
      %189 = arith.mulf %188, %188 : vector<2x32xf32>
      %cst_71 = arith.constant dense<0.000000e+00> : vector<2xf32>
      %190 = vector.multi_reduction <add>, %189, %cst_71 [1] : vector<2x32xf32> to vector<2xf32>
      %191 = vector.shape_cast %190 : vector<2xf32> to vector<2x1xf32>
      %cst_72 = arith.constant 3.200000e+01 : f32
      %192 = vector.broadcast %cst_72 : f32 to vector<2x1xf32>
      %193 = arith.divf %191, %192 : vector<2x1xf32>
      %194 = vector.broadcast %186 : vector<2x1xf32> to vector<2x32xf32>
      %195 = arith.subf %180, %194 : vector<2x32xf32>
      %cst_73 = arith.constant 9.99999974E-6 : f32
      %196 = vector.broadcast %cst_73 : f32 to vector<2x1xf32>
      %197 = arith.addf %193, %196 : vector<2x1xf32>
      %198 = math.rsqrt %197 : vector<2x1xf32>
      %199 = vector.broadcast %198 : vector<2x1xf32> to vector<2x32xf32>
      %200 = arith.mulf %195, %199 : vector<2x32xf32>
      %201 = vector.broadcast %181 : vector<1x32xf32> to vector<2x32xf32>
      %202 = arith.mulf %200, %201 : vector<2x32xf32>
      %203 = vector.broadcast %182 : vector<1x32xf32> to vector<2x32xf32>
      %204 = arith.addf %202, %203 : vector<2x32xf32>
      %205 = arith.truncf %204 : vector<2x32xf32> to vector<2x32xbf16>
      %c0_74 = arith.constant 0 : index
      %c0_75 = arith.constant 0 : index
      %206 = vector.load %arg18[%c0_74, %c0_75] : memref<32x128xbf16, #tpu.memory_space<vmem>>, vector<32x128xbf16>
      %cst_76 = arith.constant dense<0.000000e+00> : vector<2x128xf32>
      %207 = tpu.matmul %205, %206, %cst_76 {dimension_numbers = #tpu.dot_dimension_numbers<[1], [0], [0], [1], [0, 0, 1, 1], [], []>} : vector<2x32xbf16>, vector<32x128xbf16>, vector<2x128xf32> -> vector<2x128xf32>
      %c0_77 = arith.constant 0 : index
      %c0_78 = arith.constant 0 : index
      %208 = vector.load %arg19[%c0_77, %c0_78] : memref<2x128xf32, #tpu.memory_space<vmem>>, vector<2x128xf32>
      tpu.vector_store %arg19[%c0_77, %c0_78], %207 {strides = array<i32>} : memref<2x128xf32, #tpu.memory_space<vmem>>, vector<2x128xf32>,
    } else {
    }
    return
  }
  func.func @transform_0(%arg0: i32) -> (i32, i32, i32) {
    %c0_i32 = arith.constant 0 : i32
    %c0_i32_0 = arith.constant 0 : i32
    %c0_i32_1 = arith.constant 0 : i32
    %c0_i32_2 = arith.constant 0 : i32
    return %c0_i32, %c0_i32_0, %c0_i32_1 : i32, i32, i32
  }
  func.func @transform_1(%arg0: i32) -> (i32, i32) {
    %c0_i32 = arith.constant 0 : i32
    %c0_i32_0 = arith.constant 0 : i32
    %c0_i32_1 = arith.constant 0 : i32
    return %c0_i32, %c0_i32_0 : i32, i32
  }
  func.func @transform_2(%arg0: i32) -> (i32, i32) {
    %c0_i32 = arith.constant 0 : i32
    %c0_i32_0 = arith.constant 0 : i32
    %c0_i32_1 = arith.constant 0 : i32
    return %c0_i32, %c0_i32_0 : i32, i32
  }
  func.func @transform_3(%arg0: i32) -> (i32, i32, i32) {
    %c0_i32 = arith.constant 0 : i32
    %c0_i32_0 = arith.constant 0 : i32
    %c0_i32_1 = arith.constant 0 : i32
    return %arg0, %c0_i32, %c0_i32_0 : i32, i32, i32
  }
  func.func @transform_4(%arg0: i32) -> (i32, i32, i32) {
    %c0_i32 = arith.constant 0 : i32
    %c0_i32_0 = arith.constant 0 : i32
    %c0_i32_1 = arith.constant 0 : i32
    return %arg0, %c0_i32, %c0_i32_0 : i32, i32, i32
  }
  func.func @transform_5(%arg0: i32) -> (i32, i32, i32) {
    %c0_i32 = arith.constant 0 : i32
    %c0_i32_0 = arith.constant 0 : i32
    %c0_i32_1 = arith.constant 0 : i32
    return %arg0, %c0_i32, %c0_i32_0 : i32, i32, i32
  }
  func.func @transform_6(%arg0: i32) -> (i32, i32, i32) {
    %c0_i32 = arith.constant 0 : i32
    %c0_i32_0 = arith.constant 0 : i32
    %c0_i32_1 = arith.constant 0 : i32
    return %arg0, %c0_i32, %c0_i32_0 : i32, i32, i32
  }
  func.func @transform_7(%arg0: i32) -> (i32, i32, i32) {
    %c0_i32 = arith.constant 0 : i32
    %c0_i32_0 = arith.constant 0 : i32
    %c0_i32_1 = arith.constant 0 : i32
    return %arg0, %c0_i32, %c0_i32_0 : i32, i32, i32
  }
  func.func @transform_8(%arg0: i32) -> (i32, i32, i32) {
    %c0_i32 = arith.constant 0 : i32
    %c0_i32_0 = arith.constant 0 : i32
    %c0_i32_1 = arith.constant 0 : i32
    return %arg0, %c0_i32, %c0_i32_0 : i32, i32, i32
  }
  func.func @transform_9(%arg0: i32) -> (i32, i32, i32) {
    %c0_i32 = arith.constant 0 : i32
    %c0_i32_0 = arith.constant 0 : i32
    %c0_i32_1 = arith.constant 0 : i32
    return %arg0, %c0_i32, %c0_i32_0 : i32, i32, i32
  }
  func.func @transform_10(%arg0: i32) -> (i32, i32, i32) {
    %c0_i32 = arith.constant 0 : i32
    %c0_i32_0 = arith.constant 0 : i32
    %c0_i32_1 = arith.constant 0 : i32
    return %arg0, %c0_i32, %c0_i32_0 : i32, i32, i32
  }
  func.func @transform_11(%arg0: i32) -> (i32, i32, i32) {
    %c0_i32 = arith.constant 0 : i32
    %c0_i32_0 = arith.constant 0 : i32
    %c0_i32_1 = arith.constant 0 : i32
    return %arg0, %c0_i32, %c0_i32_0 : i32, i32, i32
  }
  func.func @transform_12(%arg0: i32) -> (i32, i32, i32) {
    %c0_i32 = arith.constant 0 : i32
    %c0_i32_0 = arith.constant 0 : i32
    %c0_i32_1 = arith.constant 0 : i32
    return %arg0, %c0_i32, %c0_i32_0 : i32, i32, i32
  }
  func.func @transform_13(%arg0: i32) -> (i32, i32, i32) {
    %c0_i32 = arith.constant 0 : i32
    %c0_i32_0 = arith.constant 0 : i32
    %c0_i32_1 = arith.constant 0 : i32
    return %arg0, %c0_i32, %c0_i32_0 : i32, i32, i32
  }
  func.func @transform_14(%arg0: i32) -> (i32, i32, i32) {
    %c0_i32 = arith.constant 0 : i32
    %c0_i32_0 = arith.constant 0 : i32
    %c0_i32_1 = arith.constant 0 : i32
    return %arg0, %c0_i32, %c0_i32_0 : i32, i32, i32
  }
  func.func @transform_15(%arg0: i32) -> (i32, i32) {
    %c0_i32 = arith.constant 0 : i32
    %c0_i32_0 = arith.constant 0 : i32
    %c0_i32_1 = arith.constant 0 : i32
    return %c0_i32, %c0_i32_0 : i32, i32
  }
  func.func @transform_16(%arg0: i32) -> (i32, i32) {
    %c0_i32 = arith.constant 0 : i32
    %c0_i32_0 = arith.constant 0 : i32
    %c0_i32_1 = arith.constant 0 : i32
    return %c0_i32, %c0_i32_0 : i32, i32
  }
  func.func @transform_17(%arg0: i32) -> (i32, i32) {
    %c0_i32 = arith.constant 0 : i32
    %c0_i32_0 = arith.constant 0 : i32
    %c0_i32_1 = arith.constant 0 : i32
    return %c0_i32, %c0_i32_0 : i32, i32
  }
  func.func @transform_18(%arg0: i32) -> (i32, i32) {
    %c0_i32 = arith.constant 0 : i32
    %c0_i32_0 = arith.constant 0 : i32
    %c0_i32_1 = arith.constant 0 : i32
    return %c0_i32, %c0_i32_0 : i32, i32
  }
}

</mosaic_0001>

<llo_original>
// kernel: text_encoder_forward.1
$region0: #{text_encoder_forward.1}
  #allocation0 [shape = 'u32[]', space=smem, size = 0x4, offset = 0x4, fixed_abs, tag = 'smem constant byte address 0x4 - core index']
  #allocation1 [shape = 'u32[72,128]{1,0:T(1,128)}', space=vmem, size = 0x9000, scoped, tag = 'internal scratch']
  #allocation2 [shape = 'f32[16,32]{1,0:T(8,128)}', space=vmem, size = 0x2000, scoped, tag = 'scratch operand']
  %s0 = inlined_call_operand.vmem [shape: f32[2,8,32], index: 0, kind: input, shape index: {}]
  %s1 = inlined_call_operand.hbm [shape: f32[8,32], index: 1, kind: input, shape index: {}]
  %s2 = inlined_call_operand.vmem [shape: s32[2,1], index: 2, kind: input, shape index: {}]
  %s3 = inlined_call_operand.vmem [shape: f32[2,1,32], index: 3, kind: input, shape index: {}, may-alias: {3,9}]
  %s4 = inlined_call_operand.vmem [shape: f32[2,1,32], index: 4, kind: input, shape index: {}, may-alias: {4,10}]
  %s5 = inlined_call_operand.hbm [shape: bf16[2,32,96], index: 5, kind: input, shape index: {}]
  %s6 = inlined_call_operand.vmem [shape: f32[2,1,96], index: 6, kind: input, shape index: {}]
  %s7 = inlined_call_operand.hbm [shape: bf16[2,32,32], index: 7, kind: input, shape index: {}]
  %s8 = inlined_call_operand.vmem [shape: f32[2,1,32], index: 8, kind: input, shape index: {}]
  %s9 = inlined_call_operand.vmem [shape: f32[2,1,32], index: 9, kind: input, shape index: {}, may-alias: {3,9}]
  %s10 = inlined_call_operand.vmem [shape: f32[2,1,32], index: 10, kind: input, shape index: {}, may-alias: {4,10}]
  %s11 = inlined_call_operand.hbm [shape: bf16[2,32,128], index: 11, kind: input, shape index: {}]
  %s12 = inlined_call_operand.vmem [shape: f32[2,1,128], index: 12, kind: input, shape index: {}]
  %s13 = inlined_call_operand.hbm [shape: bf16[2,128,32], index: 13, kind: input, shape index: {}]
  %s14 = inlined_call_operand.vmem [shape: f32[2,1,32], index: 14, kind: input, shape index: {}]
  %s15 = inlined_call_operand.vmem [shape: f32[1,32], index: 15, kind: input, shape index: {}]
  %s16 = inlined_call_operand.vmem [shape: f32[1,32], index: 16, kind: input, shape index: {}]
  %s17 = inlined_call_operand.hbm [shape: bf16[32,128], index: 17, kind: input, shape index: {}]
  %s18 = inlined_call_operand.hbm [shape: f32[2,128], index: 18, kind: output, shape index: {}]
  %s19 = sld [smem:[#allocation0]]
  $region137: #{text_encoder_forward.1} parent=0
    _
  %s21 = ssub.s32 1, %s19
  %s22 = scalar_select 0, %s21, %s19
  $region1: #{text_encoder_forward.1} parent=0
    #allocation3 [shape = 'u8[4096]{0}', space=vmem, size = 0x1000, scoped, tag = 'input window, operand 1, single buffered']
    #allocation4 [shape = 's32[2]{0}', space=sflag, size = 0x8, scoped, tag = 'scoped memory for text_encoder_forward.1']
    #allocation5 [shape = 's32[2]{0}', space=sflag, size = 0x8, scoped, tag = 'scoped memory for text_encoder_forward.1']
    #allocation6 [shape = 'u8[16384]{0}', space=vmem, size = 0x4000, scoped, tag = 'input window, operand 5']
    #allocation7 [shape = 's32[2]{0}', space=sflag, size = 0x8, scoped, tag = 'scoped memory for text_encoder_forward.1']
    #allocation8 [shape = 'u8[16384]{0}', space=vmem, size = 0x4000, scoped, tag = 'input window, operand 7']
    #allocation9 [shape = 'u8[16384]{0}', space=vmem, size = 0x4000, scoped, tag = 'input window, operand 11']
    #allocation10 [shape = 's32[2]{0}', space=sflag, size = 0x8, scoped, tag = 'scoped memory for text_encoder_forward.1']
    #allocation11 [shape = 'u8[65536]{0}', space=vmem, size = 0x10000, scoped, tag = 'input window, operand 13']
    #allocation12 [shape = 'u8[8192]{0}', space=vmem, size = 0x2000, scoped, tag = 'input window, operand 17, single buffered']
    #allocation13 [shape = 's32[1]{0}', space=sflag, size = 0x4, scoped, tag = 'scoped memory for text_encoder_forward.1']
    #allocation14 [shape = 'u8[1024]{0}', space=vmem, size = 0x400, scoped, tag = 'output window, operand 0, single buffered']
    %23 = vsyncpa [#allocation4], 0
    %24 = vsyncpa [#allocation7], 0
    %s25 = scalar_lea.sflag [#allocation7], 1
    %26 = vsyncpa %s25, 0
    %27 = vsyncpa [#allocation10], 0
    %s28 = scalar_lea.sflag [#allocation10], 1
    %29 = vsyncpa %s28, 0
    %30 = vsyncpa [#allocation13], 0
    %31 = vsyncpa [#allocation5], 0
    loop: start=0, step=1, limit=4
    $region2: #{text_encoder_forward.1} parent=1 // loop_pre_header
      _
    $region3: #{text_encoder_forward.1} parent=1 // loop_header
      %s33 = sphi 0, %s37
      %p34 = scmp.ge.s32.totalorder %s33, 4
      %s41 = sphi 0, %s41
      %s43 = sphi 0, %s41
      %s44 = sphi 0, %s43
      %s58 = sphi 0, %s44
      %s62 = sphi 0, %s62
      %s64 = sphi 0, %s62
      %s65 = sphi 0, %s64
      %s79 = sphi 0, %s65
      %s83 = sphi 0, %s83
      %s85 = sphi 0, %s83
      %s86 = sphi 0, %s85
      %s100 = sphi 0, %s86
      %s106 = sphi 0, %s108
      %s109 = sphi 0, %s106
      %s110 = sphi 0, %s109
      %s126 = sphi 0, %s110
      %s132 = sphi 0, %s134
      %s135 = sphi 0, %s132
      %s136 = sphi 0, %s135
      %s152 = sphi 0, %s136
      %s158 = sphi 0, %s160
      %s161 = sphi 0, %s158
      %s162 = sphi 0, %s161
      %s178 = sphi 0, %s162
      %s184 = sphi 0, %s186
      %s187 = sphi 0, %s184
      %s188 = sphi 0, %s187
      %s204 = sphi 0, %s188
      %s210 = sphi 0, %s212
      %s213 = sphi 0, %s210
      %s214 = sphi 0, %s213
      %s230 = sphi 0, %s214
      %s236 = sphi 0, %s238
      %s239 = sphi 0, %s236
      %s240 = sphi 0, %s239
      %s256 = sphi 0, %s240
      %s262 = sphi 0, %s264
      %s265 = sphi 0, %s262
      %s266 = sphi 0, %s265
      %s282 = sphi 0, %s266
      %s288 = sphi 0, %s290
      %s291 = sphi 0, %s288
      %s292 = sphi 0, %s291
      %s308 = sphi 0, %s292
      %s314 = sphi 0, %s316
      %s317 = sphi 0, %s314
      %s318 = sphi 0, %s317
      %s334 = sphi 0, %s318
      %s340 = sphi 0, %s342
      %s343 = sphi 0, %s340
      %s344 = sphi 0, %s343
      %s360 = sphi 0, %s344
      %s366 = sphi 0, %s368
      %s369 = sphi 0, %s366
      %s370 = sphi 0, %s369
      %s386 = sphi 0, %s370
      %s392 = sphi 0, %s394
      %s395 = sphi 0, %s392
      %s396 = sphi 0, %s395
      %s412 = sphi 0, %s396
      %s416 = sphi 0, %s416
      %s418 = sphi 0, %s416
      %s419 = sphi 0, %s418
      %s433 = sphi 0, %s419
      %s437 = sphi 0, %s437
      %s439 = sphi 0, %s437
      %s440 = sphi 0, %s439
      %s454 = sphi 0, %s440
      %s458 = sphi 0, %s458
      %s460 = sphi 0, %s458
      %s461 = sphi 0, %s460
      %s475 = sphi 0, %s461
      %s479 = sphi 0, %s479
      %s481 = sphi 0, %s479
      %s482 = sphi 0, %s481
      %s496 = sphi 0, %s482
    $region4: #{text_encoder_forward.1} parent=1 // loop_header_branch
      %36 = sbr.rel (%p34) target = $region8
    $region5: #{text_encoder_forward.1} parent=1 // loop_body
      %s38 = ssub.s32 %s33, 1
      %s39 = ssub.s32 %s33, 2
      %s40 = sadd.s32 %s33, 1
      %s42 = sadd.s32 %s41, 1
      %p45 = scmp.eq.s32.totalorder %s33, 1
      %p46 = scmp.ne.s32.totalorder %s41, %s43
      %p47 = scmp.eq.s32.totalorder %s33, 0
      %p48 = por %p46, %p47
      %p49 = scmp.ne.s32.totalorder %s41, %s43
      %p50 = scmp.eq.s32.totalorder %s38, 1
      %p51 = por %p49, %p50
      %p52 = scmp.ne.s32.totalorder %s43, %s44
      %p53 = scmp.eq.s32.totalorder %s38, 0
      %p54 = por %p52, %p53
      %p55 = scmp.ne.s32.totalorder %s43, %s44
      %p56 = scmp.eq.s32.totalorder %s39, 1
      %p57 = por %p55, %p56
      %p59 = scmp.ne.s32.totalorder %s44, %s58
      %p60 = scmp.eq.s32.totalorder %s39, 0
      %p61 = por %p59, %p60
      %s63 = sadd.s32 %s62, 1
      %p66 = scmp.eq.s32.totalorder %s33, 1
      %p67 = scmp.ne.s32.totalorder %s62, %s64
      %p68 = scmp.eq.s32.totalorder %s33, 0
      %p69 = por %p67, %p68
      %p70 = scmp.ne.s32.totalorder %s62, %s64
      %p71 = scmp.eq.s32.totalorder %s38, 1
      %p72 = por %p70, %p71
      %p73 = scmp.ne.s32.totalorder %s64, %s65
      %p74 = scmp.eq.s32.totalorder %s38, 0
      %p75 = por %p73, %p74
      %p76 = scmp.ne.s32.totalorder %s64, %s65
      %p77 = scmp.eq.s32.totalorder %s39, 1
      %p78 = por %p76, %p77
      %p80 = scmp.ne.s32.totalorder %s65, %s79
      %p81 = scmp.eq.s32.totalorder %s39, 0
      %p82 = por %p80, %p81
      %s84 = sadd.s32 %s83, 1
      %p87 = scmp.eq.s32.totalorder %s33, 1
      %p88 = scmp.ne.s32.totalorder %s83, %s85
      %p89 = scmp.eq.s32.totalorder %s33, 0
      %p90 = por %p88, %p89
      %p91 = scmp.ne.s32.totalorder %s83, %s85
      %p92 = scmp.eq.s32.totalorder %s38, 1
      %p93 = por %p91, %p92
      %p94 = scmp.ne.s32.totalorder %s85, %s86
      %p95 = scmp.eq.s32.totalorder %s38, 0
      %p96 = por %p94, %p95
      %p97 = scmp.ne.s32.totalorder %s85, %s86
      %p98 = scmp.eq.s32.totalorder %s39, 1
      %p99 = por %p97, %p98
      %p101 = scmp.ne.s32.totalorder %s86, %s100
      %p102 = scmp.eq.s32.totalorder %s39, 0
      %p103 = por %p101, %p102
      %s104 = ssub.s32 %s33, %s40
      %p105 = scmp.eq.s32.totalorder %s104, 0
      %s107 = sadd.s32 %s106, 1
      %s108 = scalar_select %p105, %s106, %s107
      %p111 = pneg %p105
      %p112 = scmp.eq.s32.totalorder %s33, 1
      %p113 = por %p111, %p112
      %p114 = scmp.ne.s32.totalorder %s106, %s109
      %p115 = scmp.eq.s32.totalorder %s33, 0
      %p116 = por %p114, %p115
      %p117 = scmp.ne.s32.totalorder %s106, %s109
      %p118 = scmp.eq.s32.totalorder %s38, 1
      %p119 = por %p117, %p118
      %p120 = scmp.ne.s32.totalorder %s109, %s110
      %p121 = scmp.eq.s32.totalorder %s38, 0
      %p122 = por %p120, %p121
      %p123 = scmp.ne.s32.totalorder %s109, %s110
      %p124 = scmp.eq.s32.totalorder %s39, 1
      %p125 = por %p123, %p124
      %p127 = scmp.ne.s32.totalorder %s110, %s126
      %p128 = scmp.eq.s32.totalorder %s39, 0
      %p129 = por %p127, %p128
      %s130 = ssub.s32 %s33, %s40
      %p131 = scmp.eq.s32.totalorder %s130, 0
      %s133 = sadd.s32 %s132, 1
      %s134 = scalar_select %p131, %s132, %s133
      %p137 = pneg %p131
      %p138 = scmp.eq.s32.totalorder %s33, 1
      %p139 = por %p137, %p138
      %p140 = scmp.ne.s32.totalorder %s132, %s135
      %p141 = scmp.eq.s32.totalorder %s33, 0
      %p142 = por %p140, %p141
      %p143 = scmp.ne.s32.totalorder %s132, %s135
      %p144 = scmp.eq.s32.totalorder %s38, 1
      %p145 = por %p143, %p144
      %p146 = scmp.ne.s32.totalorder %s135, %s136
      %p147 = scmp.eq.s32.totalorder %s38, 0
      %p148 = por %p146, %p147
      %p149 = scmp.ne.s32.totalorder %s135, %s136
      %p150 = scmp.eq.s32.totalorder %s39, 1
      %p151 = por %p149, %p150
      %p153 = scmp.ne.s32.totalorder %s136, %s152
      %p154 = scmp.eq.s32.totalorder %s39, 0
      %p155 = por %p153, %p154
      %s156 = ssub.s32 %s33, %s40
      %p157 = scmp.eq.s32.totalorder %s156, 0
      %s159 = sadd.s32 %s158, 1
      %s160 = scalar_select %p157, %s158, %s159
      %p163 = pneg %p157
      %p164 = scmp.eq.s32.totalorder %s33, 1
      %p165 = por %p163, %p164
      %p166 = scmp.ne.s32.totalorder %s158, %s161
      %p167 = scmp.eq.s32.totalorder %s33, 0
      %p168 = por %p166, %p167
      %p169 = scmp.ne.s32.totalorder %s158, %s161
      %p170 = scmp.eq.s32.totalorder %s38, 1
      %p171 = por %p169, %p170
      %p172 = scmp.ne.s32.totalorder %s161, %s162
      %p173 = scmp.eq.s32.totalorder %s38, 0
      %p174 = por %p172, %p173
      %p175 = scmp.ne.s32.totalorder %s161, %s162
      %p176 = scmp.eq.s32.totalorder %s39, 1
      %p177 = por %p175, %p176
      %p179 = scmp.ne.s32.totalorder %s162, %s178
      %p180 = scmp.eq.s32.totalorder %s39, 0
      %p181 = por %p179, %p180
      %s182 = ssub.s32 %s33, %s40
      %p183 = scmp.eq.s32.totalorder %s182, 0
      %s185 = sadd.s32 %s184, 1
      %s186 = scalar_select %p183, %s184, %s185
      %p189 = pneg %p183
      %p190 = scmp.eq.s32.totalorder %s33, 1
      %p191 = por %p189, %p190
      %p192 = scmp.ne.s32.totalorder %s184, %s187
      %p193 = scmp.eq.s32.totalorder %s33, 0
      %p194 = por %p192, %p193
      %p195 = scmp.ne.s32.totalorder %s184, %s187
      %p196 = scmp.eq.s32.totalorder %s38, 1
      %p197 = por %p195, %p196
      %p198 = scmp.ne.s32.totalorder %s187, %s188
      %p199 = scmp.eq.s32.totalorder %s38, 0
      %p200 = por %p198, %p199
      %p201 = scmp.ne.s32.totalorder %s187, %s188
      %p202 = scmp.eq.s32.totalorder %s39, 1
      %p203 = por %p201, %p202
      %p205 = scmp.ne.s32.totalorder %s188, %s204
      %p206 = scmp.eq.s32.totalorder %s39, 0
      %p207 = por %p205, %p206
      %s208 = ssub.s32 %s33, %s40
      %p209 = scmp.eq.s32.totalorder %s208, 0
      %s211 = sadd.s32 %s210, 1
      %s212 = scalar_select %p209, %s210, %s211
      %p215 = pneg %p209
      %p216 = scmp.eq.s32.totalorder %s33, 1
      %p217 = por %p215, %p216
      %p218 = scmp.ne.s32.totalorder %s210, %s213
      %p219 = scmp.eq.s32.totalorder %s33, 0
      %p220 = por %p218, %p219
      %p221 = scmp.ne.s32.totalorder %s210, %s213
      %p222 = scmp.eq.s32.totalorder %s38, 1
      %p223 = por %p221, %p222
      %p224 = scmp.ne.s32.totalorder %s213, %s214
      %p225 = scmp.eq.s32.totalorder %s38, 0
      %p226 = por %p224, %p225
      %p227 = scmp.ne.s32.totalorder %s213, %s214
      %p228 = scmp.eq.s32.totalorder %s39, 1
      %p229 = por %p227, %p228
      %p231 = scmp.ne.s32.totalorder %s214, %s230
      %p232 = scmp.eq.s32.totalorder %s39, 0
      %p233 = por %p231, %p232
      %s234 = ssub.s32 %s33, %s40
      %p235 = scmp.eq.s32.totalorder %s234, 0
      %s237 = sadd.s32 %s236, 1
      %s238 = scalar_select %p235, %s236, %s237
      %p241 = pneg %p235
      %p242 = scmp.eq.s32.totalorder %s33, 1
      %p243 = por %p241, %p242
      %p244 = scmp.ne.s32.totalorder %s236, %s239
      %p245 = scmp.eq.s32.totalorder %s33, 0
      %p246 = por %p244, %p245
      %p247 = scmp.ne.s32.totalorder %s236, %s239
      %p248 = scmp.eq.s32.totalorder %s38, 1
      %p249 = por %p247, %p248
      %p250 = scmp.ne.s32.totalorder %s239, %s240
      %p251 = scmp.eq.s32.totalorder %s38, 0
      %p252 = por %p250, %p251
      %p253 = scmp.ne.s32.totalorder %s239, %s240
      %p254 = scmp.eq.s32.totalorder %s39, 1
      %p255 = por %p253, %p254
      %p257 = scmp.ne.s32.totalorder %s240, %s256
      %p258 = scmp.eq.s32.totalorder %s39, 0
      %p259 = por %p257, %p258
      %s260 = ssub.s32 %s33, %s40
      %p261 = scmp.eq.s32.totalorder %s260, 0
      %s263 = sadd.s32 %s262, 1
      %s264 = scalar_select %p261, %s262, %s263
      %p267 = pneg %p261
      %p268 = scmp.eq.s32.totalorder %s33, 1
      %p269 = por %p267, %p268
      %p270 = scmp.ne.s32.totalorder %s262, %s265
      %p271 = scmp.eq.s32.totalorder %s33, 0
      %p272 = por %p270, %p271
      %p273 = scmp.ne.s32.totalorder %s262, %s265
      %p274 = scmp.eq.s32.totalorder %s38, 1
      %p275 = por %p273, %p274
      %p276 = scmp.ne.s32.totalorder %s265, %s266
      %p277 = scmp.eq.s32.totalorder %s38, 0
      %p278 = por %p276, %p277
      %p279 = scmp.ne.s32.totalorder %s265, %s266
      %p280 = scmp.eq.s32.totalorder %s39, 1
      %p281 = por %p279, %p280
      %p283 = scmp.ne.s32.totalorder %s266, %s282
      %p284 = scmp.eq.s32.totalorder %s39, 0
      %p285 = por %p283, %p284
      %s286 = ssub.s32 %s33, %s40
      %p287 = scmp.eq.s32.totalorder %s286, 0
      %s289 = sadd.s32 %s288, 1
      %s290 = scalar_select %p287, %s288, %s289
      %p293 = pneg %p287
      %p294 = scmp.eq.s32.totalorder %s33, 1
      %p295 = por %p293, %p294
      %p296 = scmp.ne.s32.totalorder %s288, %s291
      %p297 = scmp.eq.s32.totalorder %s33, 0
      %p298 = por %p296, %p297
      %p299 = scmp.ne.s32.totalorder %s288, %s291
      %p300 = scmp.eq.s32.totalorder %s38, 1
      %p301 = por %p299, %p300
      %p302 = scmp.ne.s32.totalorder %s291, %s292
      %p303 = scmp.eq.s32.totalorder %s38, 0
      %p304 = por %p302, %p303
      %p305 = scmp.ne.s32.totalorder %s291, %s292
      %p306 = scmp.eq.s32.totalorder %s39, 1
      %p307 = por %p305, %p306
      %p309 = scmp.ne.s32.totalorder %s292, %s308
      %p310 = scmp.eq.s32.totalorder %s39, 0
      %p311 = por %p309, %p310
      %s312 = ssub.s32 %s33, %s40
      %p313 = scmp.eq.s32.totalorder %s312, 0
      %s315 = sadd.s32 %s314, 1
      %s316 = scalar_select %p313, %s314, %s315
      %p319 = pneg %p313
      %p320 = scmp.eq.s32.totalorder %s33, 1
      %p321 = por %p319, %p320
      %p322 = scmp.ne.s32.totalorder %s314, %s317
      %p323 = scmp.eq.s32.totalorder %s33, 0
      %p324 = por %p322, %p323
      %p325 = scmp.ne.s32.totalorder %s314, %s317
      %p326 = scmp.eq.s32.totalorder %s38, 1
      %p327 = por %p325, %p326
      %p328 = scmp.ne.s32.totalorder %s317, %s318
      %p329 = scmp.eq.s32.totalorder %s38, 0
      %p330 = por %p328, %p329
      %p331 = scmp.ne.s32.totalorder %s317, %s318
      %p332 = scmp.eq.s32.totalorder %s39, 1
      %p333 = por %p331, %p332
      %p335 = scmp.ne.s32.totalorder %s318, %s334
      %p336 = scmp.eq.s32.totalorder %s39, 0
      %p337 = por %p335, %p336
      %s338 = ssub.s32 %s33, %s40
      %p339 = scmp.eq.s32.totalorder %s338, 0
      %s341 = sadd.s32 %s340, 1
      %s342 = scalar_select %p339, %s340, %s341
      %p345 = pneg %p339
      %p346 = scmp.eq.s32.totalorder %s33, 1
      %p347 = por %p345, %p346
      %p348 = scmp.ne.s32.totalorder %s340, %s343
      %p349 = scmp.eq.s32.totalorder %s33, 0
      %p350 = por %p348, %p349
      %p351 = scmp.ne.s32.totalorder %s340, %s343
      %p352 = scmp.eq.s32.totalorder %s38, 1
      %p353 = por %p351, %p352
      %p354 = scmp.ne.s32.totalorder %s343, %s344
      %p355 = scmp.eq.s32.totalorder %s38, 0
      %p356 = por %p354, %p355
      %p357 = scmp.ne.s32.totalorder %s343, %s344
      %p358 = scmp.eq.s32.totalorder %s39, 1
      %p359 = por %p357, %p358
      %p361 = scmp.ne.s32.totalorder %s344, %s360
      %p362 = scmp.eq.s32.totalorder %s39, 0
      %p363 = por %p361, %p362
      %s364 = ssub.s32 %s33, %s40
      %p365 = scmp.eq.s32.totalorder %s364, 0
      %s367 = sadd.s32 %s366, 1
      %s368 = scalar_select %p365, %s366, %s367
      %p371 = pneg %p365
      %p372 = scmp.eq.s32.totalorder %s33, 1
      %p373 = por %p371, %p372
      %p374 = scmp.ne.s32.totalorder %s366, %s369
      %p375 = scmp.eq.s32.totalorder %s33, 0
      %p376 = por %p374, %p375
      %p377 = scmp.ne.s32.totalorder %s366, %s369
      %p378 = scmp.eq.s32.totalorder %s38, 1
      %p379 = por %p377, %p378
      %p380 = scmp.ne.s32.totalorder %s369, %s370
      %p381 = scmp.eq.s32.totalorder %s38, 0
      %p382 = por %p380, %p381
      %p383 = scmp.ne.s32.totalorder %s369, %s370
      %p384 = scmp.eq.s32.totalorder %s39, 1
      %p385 = por %p383, %p384
      %p387 = scmp.ne.s32.totalorder %s370, %s386
      %p388 = scmp.eq.s32.totalorder %s39, 0
      %p389 = por %p387, %p388
      %s390 = ssub.s32 %s33, %s40
      %p391 = scmp.eq.s32.totalorder %s390, 0
      %s393 = sadd.s32 %s392, 1
      %s394 = scalar_select %p391, %s392, %s393
      %p397 = pneg %p391
      %p398 = scmp.eq.s32.totalorder %s33, 1
      %p399 = por %p397, %p398
      %p400 = scmp.ne.s32.totalorder %s392, %s395
      %p401 = scmp.eq.s32.totalorder %s33, 0
      %p402 = por %p400, %p401
      %p403 = scmp.ne.s32.totalorder %s392, %s395
      %p404 = scmp.eq.s32.totalorder %s38, 1
      %p405 = por %p403, %p404
      %p406 = scmp.ne.s32.totalorder %s395, %s396
      %p407 = scmp.eq.s32.totalorder %s38, 0
      %p408 = por %p406, %p407
      %p409 = scmp.ne.s32.totalorder %s395, %s396
      %p410 = scmp.eq.s32.totalorder %s39, 1
      %p411 = por %p409, %p410
      %p413 = scmp.ne.s32.totalorder %s396, %s412
      %p414 = scmp.eq.s32.totalorder %s39, 0
      %p415 = por %p413, %p414
      %s417 = sadd.s32 %s416, 1
      %p420 = scmp.eq.s32.totalorder %s33, 1
      %p421 = scmp.ne.s32.totalorder %s416, %s418
      %p422 = scmp.eq.s32.totalorder %s33, 0
      %p423 = por %p421, %p422
      %p424 = scmp.ne.s32.totalorder %s416, %s418
      %p425 = scmp.eq.s32.totalorder %s38, 1
      %p426 = por %p424, %p425
      %p427 = scmp.ne.s32.totalorder %s418, %s419
      %p428 = scmp.eq.s32.totalorder %s38, 0
      %p429 = por %p427, %p428
      %p430 = scmp.ne.s32.totalorder %s418, %s419
      %p431 = scmp.eq.s32.totalorder %s39, 1
      %p432 = por %p430, %p431
      %p434 = scmp.ne.s32.totalorder %s419, %s433
      %p435 = scmp.eq.s32.totalorder %s39, 0
      %p436 = por %p434, %p435
      %s438 = sadd.s32 %s437, 1
      %p441 = scmp.eq.s32.totalorder %s33, 1
      %p442 = scmp.ne.s32.totalorder %s437, %s439
      %p443 = scmp.eq.s32.totalorder %s33, 0
      %p444 = por %p442, %p443
      %p445 = scmp.ne.s32.totalorder %s437, %s439
      %p446 = scmp.eq.s32.totalorder %s38, 1
      %p447 = por %p445, %p446
      %p448 = scmp.ne.s32.totalorder %s439, %s440
      %p449 = scmp.eq.s32.totalorder %s38, 0
      %p450 = por %p448, %p449
      %p451 = scmp.ne.s32.totalorder %s439, %s440
      %p452 = scmp.eq.s32.totalorder %s39, 1
      %p453 = por %p451, %p452
      %p455 = scmp.ne.s32.totalorder %s440, %s454
      %p456 = scmp.eq.s32.totalorder %s39, 0
      %p457 = por %p455, %p456
      %s459 = sadd.s32 %s458, 1
      %p462 = scmp.eq.s32.totalorder %s33, 1
      %p463 = scmp.ne.s32.totalorder %s458, %s460
      %p464 = scmp.eq.s32.totalorder %s33, 0
      %p465 = por %p463, %p464
      %p466 = scmp.ne.s32.totalorder %s458, %s460
      %p467 = scmp.eq.s32.totalorder %s38, 1
      %p468 = por %p466, %p467
      %p469 = scmp.ne.s32.totalorder %s460, %s461
      %p470 = scmp.eq.s32.totalorder %s38, 0
      %p471 = por %p469, %p470
      %p472 = scmp.ne.s32.totalorder %s460, %s461
      %p473 = scmp.eq.s32.totalorder %s39, 1
      %p474 = por %p472, %p473
      %p476 = scmp.ne.s32.totalorder %s461, %s475
      %p477 = scmp.eq.s32.totalorder %s39, 0
      %p478 = por %p476, %p477
      %s480 = sadd.s32 %s479, 1
      %p483 = scmp.eq.s32.totalorder %s33, 1
      %p484 = scmp.ne.s32.totalorder %s479, %s481
      %p485 = scmp.eq.s32.totalorder %s33, 0
      %p486 = por %p484, %p485
      %p487 = scmp.ne.s32.totalorder %s479, %s481
      %p488 = scmp.eq.s32.totalorder %s38, 1
      %p489 = por %p487, %p488
      %p490 = scmp.ne.s32.totalorder %s481, %s482
      %p491 = scmp.eq.s32.totalorder %s38, 0
      %p492 = por %p490, %p491
      %p493 = scmp.ne.s32.totalorder %s481, %s482
      %p494 = scmp.eq.s32.totalorder %s39, 1
      %p495 = por %p493, %p494
      %p497 = scmp.ne.s32.totalorder %s482, %s496
      %p498 = scmp.eq.s32.totalorder %s39, 0
      %p499 = por %p497, %p498
      %p500 = scmp.le.s32.totalorder 1, %s33
      %p501 = scmp.lt.s32.totalorder %s33, 3
      %p502 = pnand %p500, %p501
      %p503 = pneg %p502
      // Predicated region
      $region9: #{text_encoder_forward.1} parent=5 // pred_check
        _
      $region10: #{text_encoder_forward.1} parent=5 // pred_check_branch
        %505 = sbr.rel (%p502) target = $region12
      $region11: #{text_encoder_forward.1} parent=5 // pred_region
        %s506 = ssub.s32 %s33, 1
        // Predicated region
        $region13: #{text_encoder_forward.1} parent=11 // pred_check
          %p507 = pneg %p54
        $region14: #{text_encoder_forward.1} parent=11 // pred_check_branch
          %509 = sbr.rel (%p507) target = $region16
        $region15: #{text_encoder_forward.1} parent=11 // pred_region
          _
        $region16: #{text_encoder_forward.1} parent=11 // pred_fallthru
          _
        // Predicated region
        $region17: #{text_encoder_forward.1} parent=11 // pred_check
          %p510 = pneg %p75
        $region18: #{text_encoder_forward.1} parent=11 // pred_check_branch
          %512 = sbr.rel (%p510) target = $region20
        $region19: #{text_encoder_forward.1} parent=11 // pred_region
          %514 = vsyncadd [#allocation4], 0
          %s516 = sshll.u32 %s1, 4
          %s517 = int_to_ptr.hbm [resolvable:$true] %s516
          %s518 = sshll.u32 [#allocation3], 4
          %s519 = int_to_ptr.vmem [resolvable:$true] %s518
          %521 = dma.hbm_to_vmem [thread:$0]  %s517, 128, %s519, [#allocation4]
        $region20: #{text_encoder_forward.1} parent=11 // pred_fallthru
          _
        // Predicated region
        $region21: #{text_encoder_forward.1} parent=11 // pred_check
          %p522 = pneg %p96
        $region22: #{text_encoder_forward.1} parent=11 // pred_check_branch
          %524 = sbr.rel (%p522) target = $region24
        $region23: #{text_encoder_forward.1} parent=11 // pred_region
          _
        $region24: #{text_encoder_forward.1} parent=11 // pred_fallthru
          _
        // Predicated region
        $region25: #{text_encoder_forward.1} parent=11 // pred_check
          %p525 = pneg %p429
        $region26: #{text_encoder_forward.1} parent=11 // pred_check_branch
          %527 = sbr.rel (%p525) target = $region28
        $region27: #{text_encoder_forward.1} parent=11 // pred_region
          _
        $region28: #{text_encoder_forward.1} parent=11 // pred_fallthru
          _
        // Predicated region
        $region29: #{text_encoder_forward.1} parent=11 // pred_check
          %p528 = pneg %p450
        $region30: #{text_encoder_forward.1} parent=11 // pred_check_branch
          %530 = sbr.rel (%p528) target = $region32
        $region31: #{text_encoder_forward.1} parent=11 // pred_region
          _
        $region32: #{text_encoder_forward.1} parent=11 // pred_fallthru
          _
        // Predicated region
        $region33: #{text_encoder_forward.1} parent=11 // pred_check
          %p531 = pneg %p471
        $region34: #{text_encoder_forward.1} parent=11 // pred_check_branch
          %533 = sbr.rel (%p531) target = $region36
        $region35: #{text_encoder_forward.1} parent=11 // pred_region
          %535 = vsyncadd [#allocation13], 0
          %s536 = sshll.u32 %s17, 4
          %s537 = int_to_ptr.hbm [resolvable:$true] %s536
          %s538 = sshll.u32 [#allocation12], 4
          %s539 = int_to_ptr.vmem [resolvable:$true] %s538
          %544 = dma.hbm_to_vmem [thread:$0]  %s537, 256, %s539, [#allocation13], 64, 64, 4
        $region36: #{text_encoder_forward.1} parent=11 // pred_fallthru
          _
      $region12: #{text_encoder_forward.1} parent=5 // pred_fallthru
        _
      %p545 = scmp.lt.s32.totalorder %s33, 2
      // Predicated region
      $region37: #{text_encoder_forward.1} parent=5 // pred_check
        %p546 = pneg %p545
      $region38: #{text_encoder_forward.1} parent=5 // pred_check_branch
        %548 = sbr.rel (%p546) target = $region40
      $region39: #{text_encoder_forward.1} parent=5 // pred_region
        // Predicated region
        $region41: #{text_encoder_forward.1} parent=39 // pred_check
          %p549 = pneg %p116
        $region42: #{text_encoder_forward.1} parent=39 // pred_check_branch
          %551 = sbr.rel (%p549) target = $region44
        $region43: #{text_encoder_forward.1} parent=39 // pred_region
          %p552 = scmp.lt.s32.totalorder %s33, 1
          %s553 = scalar_select %p552, %s33, 1
          %s554 = scalar_lea.vmem %s3, %s553
        $region44: #{text_encoder_forward.1} parent=39 // pred_fallthru
          _
        // Predicated region
        $region45: #{text_encoder_forward.1} parent=39 // pred_check
          %p555 = pneg %p142
        $region46: #{text_encoder_forward.1} parent=39 // pred_check_branch
          %557 = sbr.rel (%p555) target = $region48
        $region47: #{text_encoder_forward.1} parent=39 // pred_region
          %p558 = scmp.lt.s32.totalorder %s33, 1
          %s559 = scalar_select %p558, %s33, 1
          %s560 = scalar_lea.vmem %s4, %s559
        $region48: #{text_encoder_forward.1} parent=39 // pred_fallthru
          _
        // Predicated region
        $region49: #{text_encoder_forward.1} parent=39 // pred_check
          %p561 = pneg %p168
        $region50: #{text_encoder_forward.1} parent=39 // pred_check_branch
          %563 = sbr.rel (%p561) target = $region52
        $region51: #{text_encoder_forward.1} parent=39 // pred_region
          %s564 = sand.u32 %s33, 1
          %s565 = scalar_lea.sflag [#allocation7], %s564
          %s566 = sand.u32 %s158, 1
          %s567 = smul.addr %s566, 16
          %s568 = scalar_lea.vmem [#allocation6], %s567
          %570 = vsyncadd %s565, 0
          %s571 = smul.addr %s33, 4
          %s572 = smul.addr %s571, 4
          %s573 = scalar_lea.hbm %s5, %s572
          %s574 = sshll.u32 %s573, 4
          %s575 = int_to_ptr.hbm [resolvable:$true] %s574
          %s576 = sshll.u32 %s568, 4
          %s577 = int_to_ptr.vmem [resolvable:$true] %s576
          %582 = dma.hbm_to_vmem [thread:$0]  %s575, 256, %s577, %s565, 64, 64, 4
        $region52: #{text_encoder_forward.1} parent=39 // pred_fallthru
          _
        // Predicated region
        $region53: #{text_encoder_forward.1} parent=39 // pred_check
          %p583 = pneg %p194
        $region54: #{text_encoder_forward.1} parent=39 // pred_check_branch
          %585 = sbr.rel (%p583) target = $region56
        $region55: #{text_encoder_forward.1} parent=39 // pred_region
          %p586 = scmp.lt.s32.totalorder %s33, 1
          %s587 = scalar_select %p586, %s33, 1
          %s588 = scalar_lea.vmem %s6, %s587
        $region56: #{text_encoder_forward.1} parent=39 // pred_fallthru
          _
        // Predicated region
        $region57: #{text_encoder_forward.1} parent=39 // pred_check
          %p589 = pneg %p220
        $region58: #{text_encoder_forward.1} parent=39 // pred_check_branch
          %591 = sbr.rel (%p589) target = $region60
        $region59: #{text_encoder_forward.1} parent=39 // pred_region
          %s592 = sand.u32 %s33, 1
          %s593 = scalar_lea.sflag [#allocation7], %s592
          %s594 = sand.u32 %s210, 1
          %s595 = smul.addr %s594, 16
          %s596 = scalar_lea.vmem [#allocation8], %s595
          %598 = vsyncadd %s593, 0
          %s599 = smul.addr %s33, 4
          %s600 = smul.addr %s599, 4
          %s601 = scalar_lea.hbm %s7, %s600
          %s602 = sshll.u32 %s601, 4
          %s603 = int_to_ptr.hbm [resolvable:$true] %s602
          %s604 = sshll.u32 %s596, 4
          %s605 = int_to_ptr.vmem [resolvable:$true] %s604
          %610 = dma.hbm_to_vmem [thread:$0]  %s603, 256, %s605, %s593, 64, 64, 4
        $region60: #{text_encoder_forward.1} parent=39 // pred_fallthru
          _
        // Predicated region
        $region61: #{text_encoder_forward.1} parent=39 // pred_check
          %p611 = pneg %p246
        $region62: #{text_encoder_forward.1} parent=39 // pred_check_branch
          %613 = sbr.rel (%p611) target = $region64
        $region63: #{text_encoder_forward.1} parent=39 // pred_region
          %p614 = scmp.lt.s32.totalorder %s33, 1
          %s615 = scalar_select %p614, %s33, 1
          %s616 = scalar_lea.vmem %s8, %s615
        $region64: #{text_encoder_forward.1} parent=39 // pred_fallthru
          _
        // Predicated region
        $region65: #{text_encoder_forward.1} parent=39 // pred_check
          %p617 = pneg %p272
        $region66: #{text_encoder_forward.1} parent=39 // pred_check_branch
          %619 = sbr.rel (%p617) target = $region68
        $region67: #{text_encoder_forward.1} parent=39 // pred_region
          %p620 = scmp.lt.s32.totalorder %s33, 1
          %s621 = scalar_select %p620, %s33, 1
          %s622 = scalar_lea.vmem %s9, %s621
        $region68: #{text_encoder_forward.1} parent=39 // pred_fallthru
          _
        // Predicated region
        $region69: #{text_encoder_forward.1} parent=39 // pred_check
          %p623 = pneg %p298
        $region70: #{text_encoder_forward.1} parent=39 // pred_check_branch
          %625 = sbr.rel (%p623) target = $region72
        $region71: #{text_encoder_forward.1} parent=39 // pred_region
          %p626 = scmp.lt.s32.totalorder %s33, 1
          %s627 = scalar_select %p626, %s33, 1
          %s628 = scalar_lea.vmem %s10, %s627
        $region72: #{text_encoder_forward.1} parent=39 // pred_fallthru
          _
        // Predicated region
        $region73: #{text_encoder_forward.1} parent=39 // pred_check
          %p629 = pneg %p324
        $region74: #{text_encoder_forward.1} parent=39 // pred_check_branch
          %631 = sbr.rel (%p629) target = $region76
        $region75: #{text_encoder_forward.1} parent=39 // pred_region
          %s632 = sand.u32 %s33, 1
          %s633 = scalar_lea.sflag [#allocation10], %s632
          %s634 = sand.u32 %s314, 1
          %s635 = smul.addr %s634, 16
          %s636 = scalar_lea.vmem [#allocation9], %s635
          %638 = vsyncadd %s633, 0
          %s639 = smul.addr %s33, 4
          %s640 = smul.addr %s639, 4
          %s641 = scalar_lea.hbm %s11, %s640
          %s642 = sshll.u32 %s641, 4
          %s643 = int_to_ptr.hbm [resolvable:$true] %s642
          %s644 = sshll.u32 %s636, 4
          %s645 = int_to_ptr.vmem [resolvable:$true] %s644
          %650 = dma.hbm_to_vmem [thread:$0]  %s643, 256, %s645, %s633, 64, 64, 4
        $region76: #{text_encoder_forward.1} parent=39 // pred_fallthru
          _
        // Predicated region
        $region77: #{text_encoder_forward.1} parent=39 // pred_check
          %p651 = pneg %p350
        $region78: #{text_encoder_forward.1} parent=39 // pred_check_branch
          %653 = sbr.rel (%p651) target = $region80
        $region79: #{text_encoder_forward.1} parent=39 // pred_region
          %p654 = scmp.lt.s32.totalorder %s33, 1
          %s655 = scalar_select %p654, %s33, 1
          %s656 = scalar_lea.vmem %s12, %s655
        $region80: #{text_encoder_forward.1} parent=39 // pred_fallthru
          _
        // Predicated region
        $region81: #{text_encoder_forward.1} parent=39 // pred_check
          %p657 = pneg %p376
        $region82: #{text_encoder_forward.1} parent=39 // pred_check_branch
          %659 = sbr.rel (%p657) target = $region84
        $region83: #{text_encoder_forward.1} parent=39 // pred_region
          %s660 = sand.u32 %s33, 1
          %s661 = scalar_lea.sflag [#allocation10], %s660
          %s662 = sand.u32 %s366, 1
          %s663 = smul.addr %s662, 64
          %s664 = scalar_lea.vmem [#allocation11], %s663
          %666 = vsyncadd %s661, 0
          %s667 = smul.addr %s33, 16
          %s668 = smul.addr %s667, 4
          %s669 = scalar_lea.hbm %s13, %s668
          %s670 = sshll.u32 %s669, 4
          %s671 = int_to_ptr.hbm [resolvable:$true] %s670
          %s672 = sshll.u32 %s664, 4
          %s673 = int_to_ptr.vmem [resolvable:$true] %s672
          %678 = dma.hbm_to_vmem [thread:$0]  %s671, 1024, %s673, %s661, 64, 64, 4
        $region84: #{text_encoder_forward.1} parent=39 // pred_fallthru
          _
        // Predicated region
        $region85: #{text_encoder_forward.1} parent=39 // pred_check
          %p679 = pneg %p402
        $region86: #{text_encoder_forward.1} parent=39 // pred_check_branch
          %681 = sbr.rel (%p679) target = $region88
        $region87: #{text_encoder_forward.1} parent=39 // pred_region
          %p682 = scmp.lt.s32.totalorder %s33, 1
          %s683 = scalar_select %p682, %s33, 1
          %s684 = scalar_lea.vmem %s14, %s683
        $region88: #{text_encoder_forward.1} parent=39 // pred_fallthru
          _
      $region40: #{text_encoder_forward.1} parent=5 // pred_fallthru
        _
      %p685 = scmp.le.s32.totalorder 1, %s33
      %p686 = scmp.lt.s32.totalorder %s33, 3
      %p687 = pnand %p685, %p686
      %p688 = pneg %p687
      // Predicated region
      $region89: #{text_encoder_forward.1} parent=5 // pred_check
        _
      $region90: #{text_encoder_forward.1} parent=5 // pred_check_branch
        %690 = sbr.rel (%p687) target = $region92
      $region91: #{text_encoder_forward.1} parent=5 // pred_region
        %s691 = ssub.s32 %s33, 1
        // Predicated region
        $region93: #{text_encoder_forward.1} parent=91 // pred_check
          %p692 = pneg %p75
        $region94: #{text_encoder_forward.1} parent=91 // pred_check_branch
          %694 = sbr.rel (%p692) target = $region96
        $region95: #{text_encoder_forward.1} parent=91 // pred_region
          %696 = dma.done [#allocation4], 128
        $region96: #{text_encoder_forward.1} parent=91 // pred_fallthru
          _
        %s697 = sand.u32 %s38, 1
        %s698 = scalar_lea.sflag [#allocation7], %s697
        %s699 = sand.u32 %s161, 1
        %s700 = smul.addr %s699, 16
        %s701 = scalar_lea.vmem [#allocation6], %s700
        // Predicated region
        $region97: #{text_encoder_forward.1} parent=91 // pred_check
          %p702 = pneg %p174
        $region98: #{text_encoder_forward.1} parent=91 // pred_check_branch
          %704 = sbr.rel (%p702) target = $region100
        $region99: #{text_encoder_forward.1} parent=91 // pred_region
          %706 = dma.done %s698, 256
        $region100: #{text_encoder_forward.1} parent=91 // pred_fallthru
          _
        %s707 = sand.u32 %s38, 1
        %s708 = scalar_lea.sflag [#allocation7], %s707
        %s709 = sand.u32 %s213, 1
        %s710 = smul.addr %s709, 16
        %s711 = scalar_lea.vmem [#allocation8], %s710
        // Predicated region
        $region101: #{text_encoder_forward.1} parent=91 // pred_check
          %p712 = pneg %p226
        $region102: #{text_encoder_forward.1} parent=91 // pred_check_branch
          %714 = sbr.rel (%p712) target = $region104
        $region103: #{text_encoder_forward.1} parent=91 // pred_region
          %716 = dma.done %s708, 256
        $region104: #{text_encoder_forward.1} parent=91 // pred_fallthru
          _
        %s717 = sand.u32 %s38, 1
        %s718 = scalar_lea.sflag [#allocation10], %s717
        %s719 = sand.u32 %s317, 1
        %s720 = smul.addr %s719, 16
        %s721 = scalar_lea.vmem [#allocation9], %s720
        // Predicated region
        $region105: #{text_encoder_forward.1} parent=91 // pred_check
          %p722 = pneg %p330
        $region106: #{text_encoder_forward.1} parent=91 // pred_check_branch
          %724 = sbr.rel (%p722) target = $region108
        $region107: #{text_encoder_forward.1} parent=91 // pred_region
          %726 = dma.done %s718, 256
        $region108: #{text_encoder_forward.1} parent=91 // pred_fallthru
          _
        %s727 = sand.u32 %s38, 1
        %s728 = scalar_lea.sflag [#allocation10], %s727
        %s729 = sand.u32 %s369, 1
        %s730 = smul.addr %s729, 64
        %s731 = scalar_lea.vmem [#allocation11], %s730
        // Predicated region
        $region109: #{text_encoder_forward.1} parent=91 // pred_check
          %p732 = pneg %p382
        $region110: #{text_encoder_forward.1} parent=91 // pred_check_branch
          %734 = sbr.rel (%p732) target = $region112
        $region111: #{text_encoder_forward.1} parent=91 // pred_region
          %736 = dma.done %s728, 1024
        $region112: #{text_encoder_forward.1} parent=91 // pred_fallthru
          _
        // Predicated region
        $region113: #{text_encoder_forward.1} parent=91 // pred_check
          %p737 = pneg %p471
        $region114: #{text_encoder_forward.1} parent=91 // pred_check_branch
          %739 = sbr.rel (%p737) target = $region116
        $region115: #{text_encoder_forward.1} parent=91 // pred_region
          %741 = dma.done [#allocation13], 256
        $region116: #{text_encoder_forward.1} parent=91 // pred_fallthru
          _
        %p742 = pneg %p54
        %p743 = pneg %p51
        %p744 = pneg %p75
        %p745 = pneg %p72
        %p746 = pneg %p96
        %p747 = pneg %p93
        %p748 = scmp.lt.s32.totalorder %s38, 1
        %s749 = scalar_select %p748, %s38, 1
        %s750 = scalar_lea.vmem %s3, %s749
        %p751 = pneg %p122
        %p752 = pneg %p119
        %p753 = scmp.lt.s32.totalorder %s38, 1
        %s754 = scalar_select %p753, %s38, 1
        %s755 = scalar_lea.vmem %s4, %s754
        %p756 = pneg %p148
        %p757 = pneg %p145
        %s758 = sand.u32 %s38, 1
        %s759 = scalar_lea.sflag [#allocation7], %s758
        %s760 = sand.u32 %s161, 1
        %s761 = smul.addr %s760, 16
        %s762 = scalar_lea.vmem [#allocation6], %s761
        %p763 = pneg %p174
        %p764 = pneg %p171
        %p765 = scmp.lt.s32.totalorder %s38, 1
        %s766 = scalar_select %p765, %s38, 1
        %s767 = scalar_lea.vmem %s6, %s766
        %p768 = pneg %p200
        %p769 = pneg %p197
        %s770 = sand.u32 %s38, 1
        %s771 = scalar_lea.sflag [#allocation7], %s770
        %s772 = sand.u32 %s213, 1
        %s773 = smul.addr %s772, 16
        %s774 = scalar_lea.vmem [#allocation8], %s773
        %p775 = pneg %p226
        %p776 = pneg %p223
        %p777 = scmp.lt.s32.totalorder %s38, 1
        %s778 = scalar_select %p777, %s38, 1
        %s779 = scalar_lea.vmem %s8, %s778
        %p780 = pneg %p252
        %p781 = pneg %p249
        %p782 = scmp.lt.s32.totalorder %s38, 1
        %s783 = scalar_select %p782, %s38, 1
        %s784 = scalar_lea.vmem %s9, %s783
        %p785 = pneg %p278
        %p786 = pneg %p275
        %p787 = scmp.lt.s32.totalorder %s38, 1
        %s788 = scalar_select %p787, %s38, 1
        %s789 = scalar_lea.vmem %s10, %s788
        %p790 = pneg %p304
        %p791 = pneg %p301
        %s792 = sand.u32 %s38, 1
        %s793 = scalar_lea.sflag [#allocation10], %s792
        %s794 = sand.u32 %s317, 1
        %s795 = smul.addr %s794, 16
        %s796 = scalar_lea.vmem [#allocation9], %s795
        %p797 = pneg %p330
        %p798 = pneg %p327
        %p799 = scmp.lt.s32.totalorder %s38, 1
        %s800 = scalar_select %p799, %s38, 1
        %s801 = scalar_lea.vmem %s12, %s800
        %p802 = pneg %p356
        %p803 = pneg %p353
        %s804 = sand.u32 %s38, 1
        %s805 = scalar_lea.sflag [#allocation10], %s804
        %s806 = sand.u32 %s369, 1
        %s807 = smul.addr %s806, 64
        %s808 = scalar_lea.vmem [#allocation11], %s807
        %p809 = pneg %p382
        %p810 = pneg %p379
        %p811 = scmp.lt.s32.totalorder %s38, 1
        %s812 = scalar_select %p811, %s38, 1
        %s813 = scalar_lea.vmem %s14, %s812
        %p814 = pneg %p408
        %p815 = pneg %p405
        %p816 = pneg %p429
        %p817 = pneg %p426
        %p818 = pneg %p450
        %p819 = pneg %p447
        %p820 = pneg %p471
        %p821 = pneg %p468
        %p822 = pneg %p492
        %p823 = pneg %p489
        %p824 = scmp.lt.s32.totalorder %s38, 1
        %s825 = scalar_select %p824, %s38, 1
        %s826 = scalar_lea.vmem %s3, %s825
        %p827 = scmp.lt.s32.totalorder %s38, 1
        %s828 = scalar_select %p827, %s38, 1
        %s829 = scalar_lea.vmem %s4, %s828
        %p830 = scmp.lt.s32.totalorder %s38, 1
        %s831 = scalar_select %p830, %s38, 1
        %s832 = scalar_lea.vmem %s6, %s831
        %p833 = scmp.lt.s32.totalorder %s38, 1
        %s834 = scalar_select %p833, %s38, 1
        %s835 = scalar_lea.vmem %s8, %s834
        %p836 = scmp.lt.s32.totalorder %s38, 1
        %s837 = scalar_select %p836, %s38, 1
        %s838 = scalar_lea.vmem %s9, %s837
        %p839 = scmp.lt.s32.totalorder %s38, 1
        %s840 = scalar_select %p839, %s38, 1
        %s841 = scalar_lea.vmem %s10, %s840
        %p842 = scmp.lt.s32.totalorder %s38, 1
        %s843 = scalar_select %p842, %s38, 1
        %s844 = scalar_lea.vmem %s12, %s843
        %p845 = scmp.lt.s32.totalorder %s38, 1
        %s846 = scalar_select %p845, %s38, 1
        %s847 = scalar_lea.vmem %s14, %s846
        %p849 = scmp.eq.s32.totalorder %s38, 0
        // Predicated region
        $region117: #{text_encoder_forward.1} parent=91 // pred_check
          %p850 = pneg %p849
        $region118: #{text_encoder_forward.1} parent=91 // pred_check_branch
          %852 = sbr.rel (%p850) target = $region120
        $region119: #{text_encoder_forward.1} parent=91 // pred_region
          %v853 = vld [vmem:[%s0] sm:$0xff]
          %v854 = vld [vmem:[%s0 + $0x8] sm:$0xff]
          %v855 = vld [vmem:[#allocation3] sm:$0xff]
          %v856 = vadd.f32 %v853, %v855
          %v857 = vadd.f32 %v854, %v855
          %vm858 = vcmask 261120
          %859 = vst.msk [vmem:[#allocation2] sm:$0xff] %vm858, %v856
          %860 = vst.msk [vmem:[#allocation2 + $0x8] sm:$0xff] %vm858, %v857
        $region120: #{text_encoder_forward.1} parent=91 // pred_fallthru
          _
        %v861 = vld [vmem:[#allocation2] sm:$0xff]
        %v862 = vld [vmem:[#allocation2 + $0x8] sm:$0xff]
        %v863 = vlaneseq
        %v864 = vshrl.u32 %v863, 7
        %v865 = vlaneseq
        %v866 = vand.u32 %v865, 127
        %vm867 = vcmp.le.s32.totalorder %v866, %v864
        %v868 = vsel %vm867, 0.0, -1e+30
        %v869 = vld [vmem:[%s826] sm:$0x1]
        %v870 = vld [vmem:[%s829] sm:$0x1]
        %vm871 = vcmask 261120
        %v872 = vsel %vm871, %v861, 0.0
        %873 = vadd.xlane.f32.xlu0 %v872
        %v874 = vpop.xlane.xlu0 %873
        %v875 = vsel %vm871, %v862, 0.0
        %876 = vadd.xlane.f32.xlu0 %v875
        %v877 = vpop.xlane.xlu0 %876
        %v878 = vrcp.pop 32.0
        %v879 = vmul.f32 32.0, %v878
        %v880 = vsub.f32 1.0, %v879
        %v881 = vmul.f32 %v878, %v880
        %v882 = vadd.f32 %v878, %v881
        %vm883 = vweird.f32 %v878
        %v884 = vsel %vm883, %v878, %v882
        %v885 = vmul.f32 %v874, %v884
        %v886 = vmul.f32 %v877, %v884
        %v887 = vsub.f32 %v861, %v885
        %v888 = vsub.f32 %v862, %v886
        %v889 = vmul.f32 %v887, %v887
        %v890 = vmul.f32 %v888, %v888
        %v891 = vsel %vm871, %v889, 0.0
        %892 = vadd.xlane.f32.xlu0 %v891
        %v893 = vpop.xlane.xlu0 %892
        %v894 = vsel %vm871, %v890, 0.0
        %895 = vadd.xlane.f32.xlu0 %v894
        %v896 = vpop.xlane.xlu0 %895
        %v897 = vmul.f32 %v893, %v884
        %v898 = vmul.f32 %v896, %v884
        %v899 = vadd.f32 %v897, 1e-05
        %v900 = vadd.f32 %v898, 1e-05
        %v901 = vrsqrt.pop %v899
        %v902 = vmul.f32 %v901, %v899
        %v903 = vmul.f32 %v902, %v901
        %v904 = vmul.f32 0.5, %v903
        %v905 = vsub.f32 1.5, %v904
        %v906 = vmul.f32 %v901, %v905
        %vm907 = vweird.f32 %v899
        %vm908 = vweird.f32 %v901
        %vm909 = vmor %vm907, %vm908
        %v910 = vsel %vm909, %v901, %v906
        %v911 = vrsqrt.pop %v900
        %v912 = vmul.f32 %v911, %v900
        %v913 = vmul.f32 %v912, %v911
        %v914 = vmul.f32 0.5, %v913
        %v915 = vsub.f32 1.5, %v914
        %v916 = vmul.f32 %v911, %v915
        %vm917 = vweird.f32 %v900
        %vm918 = vweird.f32 %v911
        %vm919 = vmor %vm917, %vm918
        %v920 = vsel %vm919, %v911, %v916
        %v921 = vmul.f32 %v887, %v910
        %v922 = vmul.f32 %v888, %v920
        %v924 = vperm.slane %v869, 0
        %v926 = vmul.f32 %v921, %v924
        %v927 = vmul.f32 %v922, %v924
        %v929 = vperm.slane %v870, 0
        %v931 = vadd.f32 %v926, %v929
        %v932 = vadd.f32 %v927, %v929
        %v933 = vpack.c.bf16 %v932, %v931
        %v934 = vld [vmem:[%s701] sm:$0xf]
        %v935 = vld [vmem:[%s701 + $0x4] sm:$0xf]
        %v936 = vld [vmem:[%s701 + $0x8] sm:$0xf]
        %v937 = vld [vmem:[%s701 + $0xc] sm:$0xf]
        %v938 = vld [vmem:[%s832] sm:$0x1]
        %v940 = vperm.slane %v938, 0
        %v946 = vunpack.c.l.b16 %v934
        %v947 = vunpack.c.l.b16 %v935
        %v948 = vunpack.c.l.b16 %v936
        %v949 = vunpack.c.l.b16 %v937
        %v950 = vpack.c.b16 %v947, %v946
        %v951 = vpack.c.b16 %v949, %v948
        %v955 = vsel %vm871, %v933, 0
        %957 = vmatpush.bf16.msra.mxu0 0
        %958 = vmatpush.bf16.msra.mxu0 0
        %959 = vmatpush.bf16.msra.mxu0 0
        %960 = vmatpush.bf16.msra.mxu0 0
        %961 = vmatpush.bf16.msra.mxu0 0
        %962 = vmatpush.bf16.msra.mxu0 0
        %963 = vmatpush.bf16.msra.mxu0 %v951
        %964 = vmatpush.bf16.msra.mxu0 %v950
        %965 = vmatmul.bf16.gmra.mxu0 %v955
        %v966 = vpop.f32.mrf.mxu0
        %v967 = vadd.f32 %v940, %v966
        %v968 = vpop.f32.mrf.mxu0
        %v969 = vadd.f32 %v940, %v968
        %970 = vdwg.mxu0
        %973 = vrot.lane.b32.xlu0 %v967, 120
        %v974 = vpop.permute.xlu0 %973
        %975 = vrot.lane.b32.xlu0 %v969, 120
        %v976 = vpop.permute.xlu0 %975
        %979 = vrot.lane.b32.xlu0 %v967, 112
        %v980 = vpop.permute.xlu0 %979
        %981 = vrot.lane.b32.xlu0 %v969, 112
        %v982 = vpop.permute.xlu0 %981
        %985 = vrot.lane.b32.xlu0 %v967, 104
        %v986 = vpop.permute.xlu0 %985
        %987 = vrot.lane.b32.xlu0 %v969, 104
        %v988 = vpop.permute.xlu0 %987
        %v991 = vpack.c.bf16 %v967, %v967
        %v992 = vpack.c.bf16 %v969, %v969
        %v993 = vpack.c.bf16 %v974, %v974
        %v994 = vpack.c.bf16 %v976, %v976
        %v995 = vpack.c.bf16 %v980, %v980
        %v996 = vpack.c.bf16 %v982, %v982
        %v997 = vpack.c.bf16 %v986, %v986
        %v998 = vpack.c.bf16 %v988, %v988
        %v1000 = vunpack.c.l.b16 %v991
        %v1001 = vpack.c.b16 %v1000, %v1000
        %1002 = vrot.lane.b32.xlu0 %v1001, 96
        %v1003 = vpop.permute.xlu0 %1002
        %vm1004 = vcmask 64512
        %v1006 = vsel %vm1004, %v991, 0
        %v1009 = vsel %vm1004, %v1003, 0
        %1011 = vmatpush.bf16.xpose.msra.mxu0 0
        %1012 = vmatpush.bf16.xpose.msra.mxu0 0
        %1013 = vmatpush.bf16.xpose.msra.mxu0 0
        %1014 = vmatpush.bf16.xpose.msra.mxu0 0
        %1015 = vmatpush.bf16.xpose.msra.mxu0 0
        %1016 = vmatpush.bf16.xpose.msra.mxu0 0
        %1017 = vmatpush.bf16.xpose.msra.mxu0 0
        %1018 = vmatpush.bf16.xpose.msra.mxu0 %v1009
        %1019 = vmatmul.bf16.gmra.mxu0 %v1006
        %v1020 = vpop.f32.mrf.mxu0
        %v1021 = vadd.f32 %v868, %v1020
        %v1022 = vpop.f32.mrf.mxu0
        %1023 = vdwg.mxu0
        %v1025 = vunpack.c.l.b16 %v992
        %v1026 = vpack.c.b16 %v1025, %v1025
        %1027 = vrot.lane.b32.xlu0 %v1026, 96
        %v1028 = vpop.permute.xlu0 %1027
        %v1030 = vsel %vm1004, %v992, 0
        %v1033 = vsel %vm1004, %v1028, 0
        %1035 = vmatpush.bf16.xpose.msra.mxu0 0
        %1036 = vmatpush.bf16.xpose.msra.mxu0 0
        %1037 = vmatpush.bf16.xpose.msra.mxu0 0
        %1038 = vmatpush.bf16.xpose.msra.mxu0 0
        %1039 = vmatpush.bf16.xpose.msra.mxu0 0
        %1040 = vmatpush.bf16.xpose.msra.mxu0 0
        %1041 = vmatpush.bf16.xpose.msra.mxu0 0
        %1042 = vmatpush.bf16.xpose.msra.mxu0 %v1033
        %1043 = vmatmul.bf16.gmra.mxu0 %v1030
        %v1044 = vpop.f32.mrf.mxu0
        %v1045 = vadd.f32 %v868, %v1044
        %v1046 = vpop.f32.mrf.mxu0
        %1047 = vdwg.mxu0
        %v1049 = vunpack.c.l.b16 %v993
        %v1050 = vpack.c.b16 %v1049, %v1049
        %1051 = vrot.lane.b32.xlu0 %v1050, 96
        %v1052 = vpop.permute.xlu0 %1051
        %v1054 = vsel %vm1004, %v993, 0
        %v1057 = vsel %vm1004, %v1052, 0
        %1059 = vmatpush.bf16.xpose.msra.mxu0 0
        %1060 = vmatpush.bf16.xpose.msra.mxu0 0
        %1061 = vmatpush.bf16.xpose.msra.mxu0 0
        %1062 = vmatpush.bf16.xpose.msra.mxu0 0
        %1063 = vmatpush.bf16.xpose.msra.mxu0 0
        %1064 = vmatpush.bf16.xpose.msra.mxu0 0
        %1065 = vmatpush.bf16.xpose.msra.mxu0 0
        %1066 = vmatpush.bf16.xpose.msra.mxu0 %v1057
        %1067 = vmatmul.bf16.gmra.mxu0 %v1054
        %v1068 = vpop.f32.mrf.mxu0
        %v1069 = vadd.f32 %v868, %v1068
        %v1070 = vpop.f32.mrf.mxu0
        %1071 = vdwg.mxu0
        %v1073 = vunpack.c.l.b16 %v994
        %v1074 = vpack.c.b16 %v1073, %v1073
        %1075 = vrot.lane.b32.xlu0 %v1074, 96
        %v1076 = vpop.permute.xlu0 %1075
        %v1078 = vsel %vm1004, %v994, 0
        %v1081 = vsel %vm1004, %v1076, 0
        %1083 = vmatpush.bf16.xpose.msra.mxu0 0
        %1084 = vmatpush.bf16.xpose.msra.mxu0 0
        %1085 = vmatpush.bf16.xpose.msra.mxu0 0
        %1086 = vmatpush.bf16.xpose.msra.mxu0 0
        %1087 = vmatpush.bf16.xpose.msra.mxu0 0
        %1088 = vmatpush.bf16.xpose.msra.mxu0 0
        %1089 = vmatpush.bf16.xpose.msra.mxu0 0
        %1090 = vmatpush.bf16.xpose.msra.mxu0 %v1081
        %1091 = vmatmul.bf16.gmra.mxu0 %v1078
        %v1092 = vpop.f32.mrf.mxu0
        %v1093 = vadd.f32 %v868, %v1092
        %v1094 = vpop.f32.mrf.mxu0
        %1095 = vdwg.mxu0
        %v1097 = vunpack.c.l.b16 %v995
        %v1098 = vpack.c.b16 %v1097, %v1097
        %1099 = vrot.lane.b32.xlu0 %v1098, 96
        %v1100 = vpop.permute.xlu0 %1099
        %v1102 = vsel %vm1004, %v995, 0
        %v1105 = vsel %vm1004, %v1100, 0
        %1107 = vmatpush.bf16.xpose.msra.mxu0 0
        %1108 = vmatpush.bf16.xpose.msra.mxu0 0
        %1109 = vmatpush.bf16.xpose.msra.mxu0 0
        %1110 = vmatpush.bf16.xpose.msra.mxu0 0
        %1111 = vmatpush.bf16.xpose.msra.mxu0 0
        %1112 = vmatpush.bf16.xpose.msra.mxu0 0
        %1113 = vmatpush.bf16.xpose.msra.mxu0 0
        %1114 = vmatpush.bf16.xpose.msra.mxu0 %v1105
        %1115 = vmatmul.bf16.gmra.mxu0 %v1102
        %v1116 = vpop.f32.mrf.mxu0
        %v1117 = vadd.f32 %v868, %v1116
        %v1118 = vpop.f32.mrf.mxu0
        %1119 = vdwg.mxu0
        %v1121 = vunpack.c.l.b16 %v996
        %v1122 = vpack.c.b16 %v1121, %v1121
        %1123 = vrot.lane.b32.xlu0 %v1122, 96
        %v1124 = vpop.permute.xlu0 %1123
        %v1126 = vsel %vm1004, %v996, 0
        %v1129 = vsel %vm1004, %v1124, 0
        %1131 = vmatpush.bf16.xpose.msra.mxu0 0
        %1132 = vmatpush.bf16.xpose.msra.mxu0 0
        %1133 = vmatpush.bf16.xpose.msra.mxu0 0
        %1134 = vmatpush.bf16.xpose.msra.mxu0 0
        %1135 = vmatpush.bf16.xpose.msra.mxu0 0
        %1136 = vmatpush.bf16.xpose.msra.mxu0 0
        %1137 = vmatpush.bf16.xpose.msra.mxu0 0
        %1138 = vmatpush.bf16.xpose.msra.mxu0 %v1129
        %1139 = vmatmul.bf16.gmra.mxu0 %v1126
        %v1140 = vpop.f32.mrf.mxu0
        %v1141 = vadd.f32 %v868, %v1140
        %v1142 = vpop.f32.mrf.mxu0
        %1143 = vdwg.mxu0
        %v1145 = vunpack.c.l.b16 %v997
        %v1146 = vpack.c.b16 %v1145, %v1145
        %1147 = vrot.lane.b32.xlu0 %v1146, 96
        %v1148 = vpop.permute.xlu0 %1147
        %v1150 = vsel %vm1004, %v997, 0
        %v1153 = vsel %vm1004, %v1148, 0
        %1155 = vmatpush.bf16.xpose.msra.mxu0 0
        %1156 = vmatpush.bf16.xpose.msra.mxu0 0
        %1157 = vmatpush.bf16.xpose.msra.mxu0 0
        %1158 = vmatpush.bf16.xpose.msra.mxu0 0
        %1159 = vmatpush.bf16.xpose.msra.mxu0 0
        %1160 = vmatpush.bf16.xpose.msra.mxu0 0
        %1161 = vmatpush.bf16.xpose.msra.mxu0 0
        %1162 = vmatpush.bf16.xpose.msra.mxu0 %v1153
        %1163 = vmatmul.bf16.gmra.mxu0 %v1150
        %v1164 = vpop.f32.mrf.mxu0
        %v1165 = vadd.f32 %v868, %v1164
        %v1166 = vpop.f32.mrf.mxu0
        %1167 = vdwg.mxu0
        %v1169 = vunpack.c.l.b16 %v998
        %v1170 = vpack.c.b16 %v1169, %v1169
        %1171 = vrot.lane.b32.xlu0 %v1170, 96
        %v1172 = vpop.permute.xlu0 %1171
        %v1174 = vsel %vm1004, %v998, 0
        %v1177 = vsel %vm1004, %v1172, 0
        %1179 = vmatpush.bf16.xpose.msra.mxu0 0
        %1180 = vmatpush.bf16.xpose.msra.mxu0 0
        %1181 = vmatpush.bf16.xpose.msra.mxu0 0
        %1182 = vmatpush.bf16.xpose.msra.mxu0 0
        %1183 = vmatpush.bf16.xpose.msra.mxu0 0
        %1184 = vmatpush.bf16.xpose.msra.mxu0 0
        %1185 = vmatpush.bf16.xpose.msra.mxu0 0
        %1186 = vmatpush.bf16.xpose.msra.mxu0 %v1177
        %1187 = vmatmul.bf16.gmra.mxu0 %v1174
        %v1188 = vpop.f32.mrf.mxu0
        %v1189 = vadd.f32 %v868, %v1188
        %v1190 = vpop.f32.mrf.mxu0
        %1191 = vdwg.mxu0
        %v1192 = vsel %vm1004, %v1021, -inf
        %1193 = vmax.xlane.f32.xlu0 %v1192
        %v1194 = vpop.xlane.xlu0 %1193
        %v1195 = vsel %vm1004, %v1045, -inf
        %1196 = vmax.xlane.f32.xlu0 %v1195
        %v1197 = vpop.xlane.xlu0 %1196
        %v1198 = vsel %vm1004, %v1069, -inf
        %1199 = vmax.xlane.f32.xlu0 %v1198
        %v1200 = vpop.xlane.xlu0 %1199
        %v1201 = vsel %vm1004, %v1093, -inf
        %1202 = vmax.xlane.f32.xlu0 %v1201
        %v1203 = vpop.xlane.xlu0 %1202
        %v1204 = vsel %vm1004, %v1117, -inf
        %1205 = vmax.xlane.f32.xlu0 %v1204
        %v1206 = vpop.xlane.xlu0 %1205
        %v1207 = vsel %vm1004, %v1141, -inf
        %1208 = vmax.xlane.f32.xlu0 %v1207
        %v1209 = vpop.xlane.xlu0 %1208
        %v1210 = vsel %vm1004, %v1165, -inf
        %1211 = vmax.xlane.f32.xlu0 %v1210
        %v1212 = vpop.xlane.xlu0 %1211
        %v1213 = vsel %vm1004, %v1189, -inf
        %1214 = vmax.xlane.f32.xlu0 %v1213
        %v1215 = vpop.xlane.xlu0 %1214
        %v1216 = vsub.f32 %v1021, %v1194
        %v1217 = vsub.f32 %v1045, %v1197
        %v1218 = vsub.f32 %v1069, %v1200
        %v1219 = vsub.f32 %v1093, %v1203
        %v1220 = vsub.f32 %v1117, %v1206
        %v1221 = vsub.f32 %v1141, %v1209
        %v1222 = vsub.f32 %v1165, %v1212
        %v1223 = vsub.f32 %v1189, %v1215
        %v1224 = vmul.f32 %v1216, 1.442695
        %v1225 = vpow.pop %v1224
        %v1226 = vmul.f32 %v1217, 1.442695
        %v1227 = vpow.pop %v1226
        %v1228 = vmul.f32 %v1218, 1.442695
        %v1229 = vpow.pop %v1228
        %v1230 = vmul.f32 %v1219, 1.442695
        %v1231 = vpow.pop %v1230
        %v1232 = vmul.f32 %v1220, 1.442695
        %v1233 = vpow.pop %v1232
        %v1234 = vmul.f32 %v1221, 1.442695
        %v1235 = vpow.pop %v1234
        %v1236 = vmul.f32 %v1222, 1.442695
        %v1237 = vpow.pop %v1236
        %v1238 = vmul.f32 %v1223, 1.442695
        %v1239 = vpow.pop %v1238
        %v1240 = vsel %vm1004, %v1225, 0.0
        %1241 = vadd.xlane.f32.xlu0 %v1240
        %v1242 = vpop.xlane.xlu0 %1241
        %v1243 = vsel %vm1004, %v1227, 0.0
        %1244 = vadd.xlane.f32.xlu0 %v1243
        %v1245 = vpop.xlane.xlu0 %1244
        %v1246 = vsel %vm1004, %v1229, 0.0
        %1247 = vadd.xlane.f32.xlu0 %v1246
        %v1248 = vpop.xlane.xlu0 %1247
        %v1249 = vsel %vm1004, %v1231, 0.0
        %1250 = vadd.xlane.f32.xlu0 %v1249
        %v1251 = vpop.xlane.xlu0 %1250
        %v1252 = vsel %vm1004, %v1233, 0.0
        %1253 = vadd.xlane.f32.xlu0 %v1252
        %v1254 = vpop.xlane.xlu0 %1253
        %v1255 = vsel %vm1004, %v1235, 0.0
        %1256 = vadd.xlane.f32.xlu0 %v1255
        %v1257 = vpop.xlane.xlu0 %1256
        %v1258 = vsel %vm1004, %v1237, 0.0
        %1259 = vadd.xlane.f32.xlu0 %v1258
        %v1260 = vpop.xlane.xlu0 %1259
        %v1261 = vsel %vm1004, %v1239, 0.0
        %1262 = vadd.xlane.f32.xlu0 %v1261
        %v1263 = vpop.xlane.xlu0 %1262
        %v1264 = vrcp.pop %v1242
        %v1265 = vrcp.pop %v1245
        %v1266 = vrcp.pop %v1248
        %v1267 = vrcp.pop %v1251
        %v1268 = vrcp.pop %v1254
        %v1269 = vrcp.pop %v1257
        %v1270 = vrcp.pop %v1260
        %v1271 = vrcp.pop %v1263
        %v1272 = vmul.f32 %v1225, %v1264
        %v1273 = vmul.f32 %v1227, %v1265
        %v1274 = vmul.f32 %v1229, %v1266
        %v1275 = vmul.f32 %v1231, %v1267
        %v1276 = vmul.f32 %v1233, %v1268
        %v1277 = vmul.f32 %v1235, %v1269
        %v1278 = vmul.f32 %v1237, %v1270
        %v1279 = vmul.f32 %v1239, %v1271
        %v1280 = vpack.c.bf16 %v1272, %v1272
        %v1281 = vpack.c.bf16 %v1273, %v1273
        %v1282 = vpack.c.bf16 %v1274, %v1274
        %v1283 = vpack.c.bf16 %v1275, %v1275
        %v1284 = vpack.c.bf16 %v1276, %v1276
        %v1285 = vpack.c.bf16 %v1277, %v1277
        %v1286 = vpack.c.bf16 %v1278, %v1278
        %v1287 = vpack.c.bf16 %v1279, %v1279
        %1288 = vrot.lane.b32.xlu0 %v1001, 64
        %v1289 = vpop.permute.xlu0 %1288
        %v1291 = vsel %vm1004, %v1280, 0
        %vm1293 = vcmask 1043456
        %v1295 = vsel %vm1293, %v1289, 0
        %1297 = vmatpush.bf16.msra.mxu0 0
        %1298 = vmatpush.bf16.msra.mxu0 0
        %1299 = vmatpush.bf16.msra.mxu0 0
        %1300 = vmatpush.bf16.msra.mxu0 0
        %1301 = vmatpush.bf16.msra.mxu0 0
        %1302 = vmatpush.bf16.msra.mxu0 0
        %1303 = vmatpush.bf16.msra.mxu0 0
        %1304 = vmatpush.bf16.msra.mxu0 %v1295
        %1305 = vmatmul.bf16.gmra.mxu0 %v1291
        %v1306 = vpop.f32.mrf.mxu0
        %v1307 = vadd.f32 0.0, %v1306
        %v1308 = vpop.f32.mrf.mxu0
        %1309 = vdwg.mxu0
        %1310 = vrot.lane.b32.xlu0 %v1026, 64
        %v1311 = vpop.permute.xlu0 %1310
        %v1313 = vsel %vm1004, %v1281, 0
        %v1316 = vsel %vm1293, %v1311, 0
        %1318 = vmatpush.bf16.msra.mxu0 0
        %1319 = vmatpush.bf16.msra.mxu0 0
        %1320 = vmatpush.bf16.msra.mxu0 0
        %1321 = vmatpush.bf16.msra.mxu0 0
        %1322 = vmatpush.bf16.msra.mxu0 0
        %1323 = vmatpush.bf16.msra.mxu0 0
        %1324 = vmatpush.bf16.msra.mxu0 0
        %1325 = vmatpush.bf16.msra.mxu0 %v1316
        %1326 = vmatmul.bf16.gmra.mxu0 %v1313
        %v1327 = vpop.f32.mrf.mxu0
        %v1328 = vadd.f32 0.0, %v1327
        %v1329 = vpop.f32.mrf.mxu0
        %1330 = vdwg.mxu0
        %1331 = vrot.lane.b32.xlu0 %v1050, 64
        %v1332 = vpop.permute.xlu0 %1331
        %v1334 = vsel %vm1004, %v1282, 0
        %v1337 = vsel %vm1293, %v1332, 0
        %1339 = vmatpush.bf16.msra.mxu0 0
        %1340 = vmatpush.bf16.msra.mxu0 0
        %1341 = vmatpush.bf16.msra.mxu0 0
        %1342 = vmatpush.bf16.msra.mxu0 0
        %1343 = vmatpush.bf16.msra.mxu0 0
        %1344 = vmatpush.bf16.msra.mxu0 0
        %1345 = vmatpush.bf16.msra.mxu0 0
        %1346 = vmatpush.bf16.msra.mxu0 %v1337
        %1347 = vmatmul.bf16.gmra.mxu0 %v1334
        %v1348 = vpop.f32.mrf.mxu0
        %v1349 = vadd.f32 0.0, %v1348
        %v1350 = vpop.f32.mrf.mxu0
        %1351 = vdwg.mxu0
        %1352 = vrot.lane.b32.xlu0 %v1074, 64
        %v1353 = vpop.permute.xlu0 %1352
        %v1355 = vsel %vm1004, %v1283, 0
        %v1358 = vsel %vm1293, %v1353, 0
        %1360 = vmatpush.bf16.msra.mxu0 0
        %1361 = vmatpush.bf16.msra.mxu0 0
        %1362 = vmatpush.bf16.msra.mxu0 0
        %1363 = vmatpush.bf16.msra.mxu0 0
        %1364 = vmatpush.bf16.msra.mxu0 0
        %1365 = vmatpush.bf16.msra.mxu0 0
        %1366 = vmatpush.bf16.msra.mxu0 0
        %1367 = vmatpush.bf16.msra.mxu0 %v1358
        %1368 = vmatmul.bf16.gmra.mxu0 %v1355
        %v1369 = vpop.f32.mrf.mxu0
        %v1370 = vadd.f32 0.0, %v1369
        %v1371 = vpop.f32.mrf.mxu0
        %1372 = vdwg.mxu0
        %1373 = vrot.lane.b32.xlu0 %v1098, 64
        %v1374 = vpop.permute.xlu0 %1373
        %v1376 = vsel %vm1004, %v1284, 0
        %v1379 = vsel %vm1293, %v1374, 0
        %1381 = vmatpush.bf16.msra.mxu0 0
        %1382 = vmatpush.bf16.msra.mxu0 0
        %1383 = vmatpush.bf16.msra.mxu0 0
        %1384 = vmatpush.bf16.msra.mxu0 0
        %1385 = vmatpush.bf16.msra.mxu0 0
        %1386 = vmatpush.bf16.msra.mxu0 0
        %1387 = vmatpush.bf16.msra.mxu0 0
        %1388 = vmatpush.bf16.msra.mxu0 %v1379
        %1389 = vmatmul.bf16.gmra.mxu0 %v1376
        %v1390 = vpop.f32.mrf.mxu0
        %v1391 = vadd.f32 0.0, %v1390
        %v1392 = vpop.f32.mrf.mxu0
        %1393 = vdwg.mxu0
        %1394 = vrot.lane.b32.xlu0 %v1122, 64
        %v1395 = vpop.permute.xlu0 %1394
        %v1397 = vsel %vm1004, %v1285, 0
        %v1400 = vsel %vm1293, %v1395, 0
        %1402 = vmatpush.bf16.msra.mxu0 0
        %1403 = vmatpush.bf16.msra.mxu0 0
        %1404 = vmatpush.bf16.msra.mxu0 0
        %1405 = vmatpush.bf16.msra.mxu0 0
        %1406 = vmatpush.bf16.msra.mxu0 0
        %1407 = vmatpush.bf16.msra.mxu0 0
        %1408 = vmatpush.bf16.msra.mxu0 0
        %1409 = vmatpush.bf16.msra.mxu0 %v1400
        %1410 = vmatmul.bf16.gmra.mxu0 %v1397
        %v1411 = vpop.f32.mrf.mxu0
        %v1412 = vadd.f32 0.0, %v1411
        %v1413 = vpop.f32.mrf.mxu0
        %1414 = vdwg.mxu0
        %1415 = vrot.lane.b32.xlu0 %v1146, 64
        %v1416 = vpop.permute.xlu0 %1415
        %v1418 = vsel %vm1004, %v1286, 0
        %v1421 = vsel %vm1293, %v1416, 0
        %1423 = vmatpush.bf16.msra.mxu0 0
        %1424 = vmatpush.bf16.msra.mxu0 0
        %1425 = vmatpush.bf16.msra.mxu0 0
        %1426 = vmatpush.bf16.msra.mxu0 0
        %1427 = vmatpush.bf16.msra.mxu0 0
        %1428 = vmatpush.bf16.msra.mxu0 0
        %1429 = vmatpush.bf16.msra.mxu0 0
        %1430 = vmatpush.bf16.msra.mxu0 %v1421
        %1431 = vmatmul.bf16.gmra.mxu0 %v1418
        %v1432 = vpop.f32.mrf.mxu0
        %v1433 = vadd.f32 0.0, %v1432
        %v1434 = vpop.f32.mrf.mxu0
        %1435 = vdwg.mxu0
        %1436 = vrot.lane.b32.xlu0 %v1170, 64
        %v1437 = vpop.permute.xlu0 %1436
        %v1439 = vsel %vm1004, %v1287, 0
        %v1442 = vsel %vm1293, %v1437, 0
        %1444 = vmatpush.bf16.msra.mxu0 0
        %1445 = vmatpush.bf16.msra.mxu0 0
        %1446 = vmatpush.bf16.msra.mxu0 0
        %1447 = vmatpush.bf16.msra.mxu0 0
        %1448 = vmatpush.bf16.msra.mxu0 0
        %1449 = vmatpush.bf16.msra.mxu0 0
        %1450 = vmatpush.bf16.msra.mxu0 0
        %1451 = vmatpush.bf16.msra.mxu0 %v1442
        %1452 = vmatmul.bf16.gmra.mxu0 %v1439
        %v1453 = vpop.f32.mrf.mxu0
        %v1454 = vadd.f32 0.0, %v1453
        %v1455 = vpop.f32.mrf.mxu0
        %1456 = vdwg.mxu0
        %1459 = vrot.lane.b32.xlu0 %v1349, 8
        %v1460 = vpop.permute.xlu0 %1459
        %1461 = vrot.lane.b32.xlu0 %v1370, 8
        %v1462 = vpop.permute.xlu0 %1461
        %1467 = vrot.lane.b32.xlu0 %v1391, 16
        %v1468 = vpop.permute.xlu0 %1467
        %1469 = vrot.lane.b32.xlu0 %v1412, 16
        %v1470 = vpop.permute.xlu0 %1469
        %1475 = vrot.lane.b32.xlu0 %v1433, 24
        %v1476 = vpop.permute.xlu0 %1475
        %1477 = vrot.lane.b32.xlu0 %v1454, 24
        %v1478 = vpop.permute.xlu0 %1477
        %v1481 = vsel %vm1004, %v1307, %v1460
        %v1482 = vsel %vm1004, %v1328, %v1462
        %vm1483 = vcmask 130048
        %v1484 = vsel %vm1483, %v1481, %v1468
        %v1485 = vsel %vm1483, %v1482, %v1470
        %vm1486 = vcmask 195584
        %v1487 = vsel %vm1486, %v1484, %v1476
        %v1488 = vsel %vm1486, %v1485, %v1478
        %v1489 = vpack.c.bf16 %v1488, %v1487
        %v1490 = vld [vmem:[%s711] sm:$0xf]
        %v1491 = vld [vmem:[%s711 + $0x4] sm:$0xf]
        %v1492 = vld [vmem:[%s711 + $0x8] sm:$0xf]
        %v1493 = vld [vmem:[%s711 + $0xc] sm:$0xf]
        %v1498 = vunpack.c.l.b16 %v1490
        %v1499 = vunpack.c.l.b16 %v1491
        %v1500 = vunpack.c.l.b16 %v1492
        %v1501 = vunpack.c.l.b16 %v1493
        %v1502 = vpack.c.b16 %v1499, %v1498
        %v1503 = vpack.c.b16 %v1501, %v1500
        %v1507 = vsel %vm871, %v1489, 0
        %1509 = vmatpush.bf16.msra.mxu0 0
        %1510 = vmatpush.bf16.msra.mxu0 0
        %1511 = vmatpush.bf16.msra.mxu0 0
        %1512 = vmatpush.bf16.msra.mxu0 0
        %1513 = vmatpush.bf16.msra.mxu0 0
        %1514 = vmatpush.bf16.msra.mxu0 0
        %1515 = vmatpush.bf16.msra.mxu0 %v1503
        %1516 = vmatpush.bf16.msra.mxu0 %v1502
        %1517 = vmatmul.bf16.gmra.mxu0 %v1507
        %v1518 = vpop.f32.mrf.mxu0
        %v1519 = vadd.f32 0.0, %v1518
        %v1520 = vpop.f32.mrf.mxu0
        %v1521 = vadd.f32 0.0, %v1520
        %1522 = vdwg.mxu0
        %v1523 = vadd.f32 %v861, %v1519
        %v1524 = vadd.f32 %v862, %v1521
        %v1525 = vld [vmem:[%s835] sm:$0x1]
        %v1527 = vperm.slane %v1525, 0
        %v1529 = vadd.f32 %v1523, %v1527
        %v1530 = vadd.f32 %v1524, %v1527
        %v1531 = vld [vmem:[%s838] sm:$0x1]
        %v1532 = vld [vmem:[%s841] sm:$0x1]
        %v1533 = vsel %vm871, %v1529, 0.0
        %1534 = vadd.xlane.f32.xlu0 %v1533
        %v1535 = vpop.xlane.xlu0 %1534
        %v1536 = vsel %vm871, %v1530, 0.0
        %1537 = vadd.xlane.f32.xlu0 %v1536
        %v1538 = vpop.xlane.xlu0 %1537
        %v1539 = vmul.f32 %v1535, %v884
        %v1540 = vmul.f32 %v1538, %v884
        %v1541 = vsub.f32 %v1529, %v1539
        %v1542 = vsub.f32 %v1530, %v1540
        %v1543 = vmul.f32 %v1541, %v1541
        %v1544 = vmul.f32 %v1542, %v1542
        %v1545 = vsel %vm871, %v1543, 0.0
        %1546 = vadd.xlane.f32.xlu0 %v1545
        %v1547 = vpop.xlane.xlu0 %1546
        %v1548 = vsel %vm871, %v1544, 0.0
        %1549 = vadd.xlane.f32.xlu0 %v1548
        %v1550 = vpop.xlane.xlu0 %1549
        %v1551 = vmul.f32 %v1547, %v884
        %v1552 = vmul.f32 %v1550, %v884
        %v1553 = vadd.f32 %v1551, 1e-05
        %v1554 = vadd.f32 %v1552, 1e-05
        %v1555 = vrsqrt.pop %v1553
        %v1556 = vmul.f32 %v1555, %v1553
        %v1557 = vmul.f32 %v1556, %v1555
        %v1558 = vmul.f32 0.5, %v1557
        %v1559 = vsub.f32 1.5, %v1558
        %v1560 = vmul.f32 %v1555, %v1559
        %vm1561 = vweird.f32 %v1553
        %vm1562 = vweird.f32 %v1555
        %vm1563 = vmor %vm1561, %vm1562
        %v1564 = vsel %vm1563, %v1555, %v1560
        %v1565 = vrsqrt.pop %v1554
        %v1566 = vmul.f32 %v1565, %v1554
        %v1567 = vmul.f32 %v1566, %v1565
        %v1568 = vmul.f32 0.5, %v1567
        %v1569 = vsub.f32 1.5, %v1568
        %v1570 = vmul.f32 %v1565, %v1569
        %vm1571 = vweird.f32 %v1554
        %vm1572 = vweird.f32 %v1565
        %vm1573 = vmor %vm1571, %vm1572
        %v1574 = vsel %vm1573, %v1565, %v1570
        %v1575 = vmul.f32 %v1541, %v1564
        %v1576 = vmul.f32 %v1542, %v1574
        %v1578 = vperm.slane %v1531, 0
        %v1580 = vmul.f32 %v1575, %v1578
        %v1581 = vmul.f32 %v1576, %v1578
        %v1583 = vperm.slane %v1532, 0
        %v1585 = vadd.f32 %v1580, %v1583
        %v1586 = vadd.f32 %v1581, %v1583
        %v1587 = vpack.c.bf16 %v1586, %v1585
        %v1588 = vld [vmem:[%s721] sm:$0xf]
        %v1589 = vld [vmem:[%s721 + $0x4] sm:$0xf]
        %v1590 = vld [vmem:[%s721 + $0x8] sm:$0xf]
        %v1591 = vld [vmem:[%s721 + $0xc] sm:$0xf]
        %v1592 = vld [vmem:[%s844] sm:$0x1]
        %v1594 = vperm.slane %v1592, 0
        %v1600 = vunpack.c.l.b16 %v1588
        %v1601 = vunpack.c.l.b16 %v1589
        %v1602 = vunpack.c.l.b16 %v1590
        %v1603 = vunpack.c.l.b16 %v1591
        %v1604 = vpack.c.b16 %v1601, %v1600
        %v1605 = vpack.c.b16 %v1603, %v1602
        %v1609 = vsel %vm871, %v1587, 0
        %1611 = vmatpush.bf16.msra.mxu0 0
        %1612 = vmatpush.bf16.msra.mxu0 0
        %1613 = vmatpush.bf16.msra.mxu0 0
        %1614 = vmatpush.bf16.msra.mxu0 0
        %1615 = vmatpush.bf16.msra.mxu0 0
        %1616 = vmatpush.bf16.msra.mxu0 0
        %1617 = vmatpush.bf16.msra.mxu0 %v1605
        %1618 = vmatpush.bf16.msra.mxu0 %v1604
        %1619 = vmatmul.bf16.gmra.mxu0 %v1609
        %v1620 = vpop.f32.mrf.mxu0
        %v1621 = vadd.f32 %v1594, %v1620
        %v1622 = vpop.f32.mrf.mxu0
        %v1623 = vadd.f32 %v1594, %v1622
        %1624 = vdwg.mxu0
        %v1625 = vmul.f32 %v1621, 1.702
        %v1626 = vmul.f32 %v1623, 1.702
        %v1627 = vxor.u32 %v1625, 2147483648
        %v1628 = vxor.u32 %v1626, 2147483648
        %v1629 = vmul.f32 %v1627, 1.442695
        %v1630 = vpow.pop %v1629
        %v1631 = vmul.f32 %v1628, 1.442695
        %v1632 = vpow.pop %v1631
        %v1633 = vadd.f32 %v1630, 1.0
        %v1634 = vadd.f32 %v1632, 1.0
        %v1635 = vrcp.pop %v1633
        %v1636 = vmul.f32 %v1633, %v1635
        %v1637 = vsub.f32 1.0, %v1636
        %v1638 = vmul.f32 %v1635, %v1637
        %v1639 = vadd.f32 %v1635, %v1638
        %vm1640 = vweird.f32 %v1633
        %vm1641 = vweird.f32 %v1635
        %vm1642 = vmor %vm1640, %vm1641
        %v1643 = vsel %vm1642, %v1635, %v1639
        %v1644 = vand.u32 2147483647, %v1633
        %vm1645 = vcmp.eq.f32.partialorder %v1644, 8.507059e+37
        %v1646 = vand.u32 %v1633, 2147483648
        %v1647 = vor.u32 1.1754944e-38, %v1646
        %v1648 = vsel %vm1645, %v1647, %v1643
        %v1649 = vmul.f32 1.0, %v1648
        %v1650 = vrcp.pop %v1634
        %v1651 = vmul.f32 %v1634, %v1650
        %v1652 = vsub.f32 1.0, %v1651
        %v1653 = vmul.f32 %v1650, %v1652
        %v1654 = vadd.f32 %v1650, %v1653
        %vm1655 = vweird.f32 %v1634
        %vm1656 = vweird.f32 %v1650
        %vm1657 = vmor %vm1655, %vm1656
        %v1658 = vsel %vm1657, %v1650, %v1654
        %v1659 = vand.u32 2147483647, %v1634
        %vm1660 = vcmp.eq.f32.partialorder %v1659, 8.507059e+37
        %v1661 = vand.u32 %v1634, 2147483648
        %v1662 = vor.u32 1.1754944e-38, %v1661
        %v1663 = vsel %vm1660, %v1662, %v1658
        %v1664 = vmul.f32 1.0, %v1663
        %v1665 = vmul.f32 %v1621, %v1649
        %v1666 = vmul.f32 %v1623, %v1664
        %v1667 = vpack.c.bf16 %v1666, %v1665
        %v1668 = vld [vmem:[%s731] sm:$0xf]
        %v1669 = vld [vmem:[%s731 + $0x4] sm:$0xf]
        %v1670 = vld [vmem:[%s731 + $0x8] sm:$0xf]
        %v1671 = vld [vmem:[%s731 + $0xc] sm:$0xf]
        %v1672 = vld [vmem:[%s731 + $0x10] sm:$0xf]
        %v1673 = vld [vmem:[%s731 + $0x14] sm:$0xf]
        %v1674 = vld [vmem:[%s731 + $0x18] sm:$0xf]
        %v1675 = vld [vmem:[%s731 + $0x1c] sm:$0xf]
        %v1676 = vld [vmem:[%s731 + $0x20] sm:$0xf]
        %v1677 = vld [vmem:[%s731 + $0x24] sm:$0xf]
        %v1678 = vld [vmem:[%s731 + $0x28] sm:$0xf]
        %v1679 = vld [vmem:[%s731 + $0x2c] sm:$0xf]
        %v1680 = vld [vmem:[%s731 + $0x30] sm:$0xf]
        %v1681 = vld [vmem:[%s731 + $0x34] sm:$0xf]
        %v1682 = vld [vmem:[%s731 + $0x38] sm:$0xf]
        %v1683 = vld [vmem:[%s731 + $0x3c] sm:$0xf]
        %v1700 = vunpack.c.l.b16 %v1668
        %v1701 = vunpack.c.l.b16 %v1669
        %v1702 = vunpack.c.l.b16 %v1670
        %v1703 = vunpack.c.l.b16 %v1671
        %v1704 = vunpack.c.l.b16 %v1672
        %v1705 = vunpack.c.l.b16 %v1673
        %v1706 = vunpack.c.l.b16 %v1674
        %v1707 = vunpack.c.l.b16 %v1675
        %v1708 = vunpack.c.l.b16 %v1676
        %v1709 = vunpack.c.l.b16 %v1677
        %v1710 = vunpack.c.l.b16 %v1678
        %v1711 = vunpack.c.l.b16 %v1679
        %v1712 = vunpack.c.l.b16 %v1680
        %v1713 = vunpack.c.l.b16 %v1681
        %v1714 = vunpack.c.l.b16 %v1682
        %v1715 = vunpack.c.l.b16 %v1683
        %v1716 = vpack.c.b16 %v1701, %v1700
        %v1717 = vpack.c.b16 %v1703, %v1702
        %v1718 = vpack.c.b16 %v1705, %v1704
        %v1719 = vpack.c.b16 %v1707, %v1706
        %v1720 = vpack.c.b16 %v1709, %v1708
        %v1721 = vpack.c.b16 %v1711, %v1710
        %v1722 = vpack.c.b16 %v1713, %v1712
        %v1723 = vpack.c.b16 %v1715, %v1714
        %1732 = vmatpush.bf16.msra.mxu0 %v1723
        %1733 = vmatpush.bf16.msra.mxu0 %v1722
        %1734 = vmatpush.bf16.msra.mxu0 %v1721
        %1735 = vmatpush.bf16.msra.mxu0 %v1720
        %1736 = vmatpush.bf16.msra.mxu0 %v1719
        %1737 = vmatpush.bf16.msra.mxu0 %v1718
        %1738 = vmatpush.bf16.msra.mxu0 %v1717
        %1739 = vmatpush.bf16.msra.mxu0 %v1716
        %1740 = vmatmul.bf16.gmra.mxu0 %v1667
        %v1741 = vpop.f32.mrf.mxu0
        %v1742 = vadd.f32 0.0, %v1741
        %v1743 = vpop.f32.mrf.mxu0
        %v1744 = vadd.f32 0.0, %v1743
        %1745 = vdwg.mxu0
        %v1746 = vadd.f32 %v1529, %v1742
        %v1747 = vadd.f32 %v1530, %v1744
        %v1748 = vld [vmem:[%s847] sm:$0x1]
        %v1750 = vperm.slane %v1748, 0
        %v1752 = vadd.f32 %v1746, %v1750
        %v1753 = vadd.f32 %v1747, %v1750
        %1754 = vst.msk [vmem:[#allocation2] sm:$0xff] %vm871, %v1752
        %1755 = vst.msk [vmem:[#allocation2 + $0x8] sm:$0xff] %vm871, %v1753
        %p1756 = scmp.eq.s32.totalorder %s38, 1
        // Predicated region
        $region121: #{text_encoder_forward.1} parent=91 // pred_check
          %p1757 = pneg %p1756
        $region122: #{text_encoder_forward.1} parent=91 // pred_check_branch
          %1759 = sbr.rel (%p1757) target = $region124
        $region123: #{text_encoder_forward.1} parent=91 // pred_region
          %v1760 = vld [vmem:[%s2] sm:$0x3]
          %1761 = vset.pattern.permute.xlu0 0
          %1762 = vperm.xlu0 %1761, %v1760
          %v1763 = vpop.permute.xlu0 %1762
          %vm1764 = vcmp.eq.s32.totalorder %v866, %v1763
          %v1765 = vsel %vm1764, 1, 0
          %v1766 = vcvt.s32.f32 %v1765
          %v1767 = vperm.slane %v1766, 0
          %v1768 = vlaneseq
          %v1769 = vshrl.u32 %v1768, 7
          %1771 = vset.pattern.permute.xlu0 %v1769
          %1772 = vperm.xlu0 %1771, %v1767
          %v1773 = vpop.permute.xlu0 %1772
          %v1774 = vperm.slane %v1766, 1
          %v1775 = vlaneseq
          %v1776 = vshrl.u32 %v1775, 7
          %1778 = vset.pattern.permute.xlu0 %v1776
          %1779 = vperm.xlu0 %1778, %v1774
          %v1780 = vpop.permute.xlu0 %1779
          %v1781 = vmul.f32 %v1752, %v1773
          %v1782 = vmul.f32 %v1753, %v1780
          %v1783 = vsel %vm871, %v1781, 0.0
          %v1784 = vrot.slane %v1783, 4
          %v1785 = vadd.f32 %v1783, %v1784
          %v1786 = vrot.slane %v1785, 2
          %v1787 = vadd.f32 %v1785, %v1786
          %v1788 = vrot.slane %v1787, 1
          %v1789 = vadd.f32 %v1787, %v1788
          %v1790 = vsel %vm871, %v1782, 0.0
          %v1791 = vrot.slane %v1790, 4
          %v1792 = vadd.f32 %v1790, %v1791
          %v1793 = vrot.slane %v1792, 2
          %v1794 = vadd.f32 %v1792, %v1793
          %v1795 = vrot.slane %v1794, 1
          %v1796 = vadd.f32 %v1794, %v1795
          %v1797 = vld [vmem:[%s15] sm:$0x1]
          %v1798 = vld [vmem:[%s16] sm:$0x1]
          %vm1801 = vcmask 1041409
          %v1802 = vsel %vm1801, %v1796, %v1789
          %vm1804 = vcmask 254976
          %v1805 = vsel %vm1804, %v1802, 0.0
          %1806 = vadd.xlane.f32.xlu0 %v1805
          %v1807 = vpop.xlane.xlu0 %1806
          %v1808 = vmul.f32 %v1807, %v884
          %v1810 = vrot.slane %v1808, 1
          %v1813 = vsub.f32 %v1789, %v1808
          %v1814 = vsub.f32 %v1796, %v1810
          %v1815 = vmul.f32 %v1813, %v1813
          %v1816 = vmul.f32 %v1814, %v1814
          %v1819 = vrot.slane %v1816, 7
          %v1820 = vsel %vm1801, %v1819, %v1815
          %v1822 = vsel %vm1804, %v1820, 0.0
          %1823 = vadd.xlane.f32.xlu0 %v1822
          %v1824 = vpop.xlane.xlu0 %1823
          %v1825 = vmul.f32 %v1824, %v884
          %v1826 = vadd.f32 %v1825, 1e-05
          %v1827 = vrsqrt.pop %v1826
          %v1828 = vmul.f32 %v1827, %v1826
          %v1829 = vmul.f32 %v1828, %v1827
          %v1830 = vmul.f32 0.5, %v1829
          %v1831 = vsub.f32 1.5, %v1830
          %v1832 = vmul.f32 %v1827, %v1831
          %vm1833 = vweird.f32 %v1826
          %vm1834 = vweird.f32 %v1827
          %vm1835 = vmor %vm1833, %vm1834
          %v1836 = vsel %vm1835, %v1827, %v1832
          %v1838 = vrot.slane %v1836, 1
          %v1841 = vmul.f32 %v1813, %v1836
          %v1842 = vmul.f32 %v1814, %v1838
          %v1844 = vperm.slane %v1797, 0
          %v1846 = vmul.f32 %v1841, %v1844
          %v1847 = vmul.f32 %v1842, %v1844
          %v1849 = vperm.slane %v1798, 0
          %v1851 = vadd.f32 %v1846, %v1849
          %v1852 = vadd.f32 %v1847, %v1849
          %v1853 = vpack.c.bf16 %v1851, %v1851
          %v1854 = vpack.c.bf16 %v1852, %v1852
          %v1855 = vld [vmem:[#allocation12] sm:$0xf]
          %v1856 = vld [vmem:[#allocation12 + $0x4] sm:$0xf]
          %v1857 = vld [vmem:[#allocation12 + $0x8] sm:$0xf]
          %v1858 = vld [vmem:[#allocation12 + $0xc] sm:$0xf]
          %v1861 = vunpack.c.l.b16 %v1853
          %v1862 = vunpack.c.l.b16 %v1854
          %v1863 = vrot.slane %v1862, 7
          %v1864 = vsel %vm1801, %v1863, %v1861
          %v1865 = vpack.c.b16 %v1864, %v1864
          %v1870 = vunpack.c.l.b16 %v1855
          %v1871 = vunpack.c.l.b16 %v1856
          %v1872 = vunpack.c.l.b16 %v1857
          %v1873 = vunpack.c.l.b16 %v1858
          %v1874 = vpack.c.b16 %v1871, %v1870
          %v1875 = vpack.c.b16 %v1873, %v1872
          %v1879 = vsel %vm871, %v1865, 0
          %1881 = vmatpush.bf16.msra.mxu0 0
          %1882 = vmatpush.bf16.msra.mxu0 0
          %1883 = vmatpush.bf16.msra.mxu0 0
          %1884 = vmatpush.bf16.msra.mxu0 0
          %1885 = vmatpush.bf16.msra.mxu0 0
          %1886 = vmatpush.bf16.msra.mxu0 0
          %1887 = vmatpush.bf16.msra.mxu0 %v1875
          %1888 = vmatpush.bf16.msra.mxu0 %v1874
          %1889 = vmatmul.bf16.gmra.mxu0 %v1879
          %v1890 = vpop.f32.mrf.mxu0
          %v1891 = vadd.f32 0.0, %v1890
          %v1892 = vpop.f32.mrf.mxu0
          %1893 = vdwg.mxu0
          %1894 = vst [vmem:[#allocation14] sm:$0x3] %v1891
        $region124: #{text_encoder_forward.1} parent=91 // pred_fallthru
          _
        // Predicated region
        $region125: #{text_encoder_forward.1} parent=91 // pred_check
          %p1895 = pneg %p489
        $region126: #{text_encoder_forward.1} parent=91 // pred_check_branch
          %1897 = sbr.rel (%p1895) target = $region128
        $region127: #{text_encoder_forward.1} parent=91 // pred_region
          %1899 = vsyncadd [#allocation5], 0
          %s1901 = sshll.u32 [#allocation14], 4
          %s1902 = int_to_ptr.vmem [resolvable:$true] %s1901
          %s1903 = sshll.u32 %s18, 4
          %s1904 = int_to_ptr.hbm [resolvable:$true] %s1903
          %1906 = dma.vmem_to_hbm [thread:$0]  %s1902, 32, %s1904, [#allocation5]
        $region128: #{text_encoder_forward.1} parent=91 // pred_fallthru
          _
        // Predicated region
        $region129: #{text_encoder_forward.1} parent=91 // pred_check
          %p1907 = pneg %p489
        $region130: #{text_encoder_forward.1} parent=91 // pred_check_branch
          %1909 = sbr.rel (%p1907) target = $region132
        $region131: #{text_encoder_forward.1} parent=91 // pred_region
          %1911 = dma.done [#allocation5], 32
        $region132: #{text_encoder_forward.1} parent=91 // pred_fallthru
          _
      $region92: #{text_encoder_forward.1} parent=5 // pred_fallthru
        _
      %p1912 = scmp.le.s32.totalorder 2, %s33
      // Predicated region
      $region133: #{text_encoder_forward.1} parent=5 // pred_check
        %p1913 = pneg %p1912
      $region134: #{text_encoder_forward.1} parent=5 // pred_check_branch
        %1915 = sbr.rel (%p1913) target = $region136
      $region135: #{text_encoder_forward.1} parent=5 // pred_region
        %s1916 = ssub.s32 %s33, 2
      $region136: #{text_encoder_forward.1} parent=5 // pred_fallthru
        _
    $region6: #{text_encoder_forward.1} parent=1 // loop_footer
      %s37 = sadd.s32 1, %s33
    $region7: #{text_encoder_forward.1} parent=1 // loop_footer_branch
      %32 = sbr.rel target = $region3
    $region8: #{text_encoder_forward.1} parent=1 // loop_exit
      _
    %1917 = vsyncpa [#allocation4], 1
    %s1918 = scalar_lea.sflag [#allocation4], 1
    %1919 = vsyncpa %s1918, 1
    %1920 = vsyncpa [#allocation7], 1
    %s1921 = scalar_lea.sflag [#allocation7], 1
    %1922 = vsyncpa %s1921, 1
    %1923 = vsyncpa [#allocation10], 1
    %s1924 = scalar_lea.sflag [#allocation10], 1
    %1925 = vsyncpa %s1924, 1
    %1926 = vsyncpa [#allocation13], 1
    %1927 = vsyncpa [#allocation5], 1
    %s1928 = scalar_lea.sflag [#allocation5], 1
    %1929 = vsyncpa %s1928, 1

</llo_original>
